<compile_context>
chip_gen: v7x
topology: tpu7x:2x2x1
jax: 0.10.0
libtpu: 0.0.40
codegen_flags: <defaults>
</compile_context>

<pallas_src>
import functools
import math

import jax
import jax.numpy as jnp
from jax.experimental import pallas as pl
from jax.experimental.pallas import tpu as pltpu

H = 100        # LSTM hidden size (logical)
HP = 128       # padded hidden size (lane-aligned)
FC = 128       # fc1 width
IN = 2         # LSTM input size
N_ACT = 2      # action head width
HEADP = 128    # lane-padded fused head width (cols 0:2 action logits, col 2 value)


def _policy_kernel(x_ref, wih_ref, whh_ref, w1_ref, b1_ref, wh_ref, bh_ref,
                   out_ref, *, seq_len, batch):
    B = batch

    # --- Input projection hoisted out of the recurrence (one matmul) -------
    x_flat = x_ref[...].astype(jnp.bfloat16)                        # (T*B, IN), time-major
    x_proj = jnp.dot(x_flat, wih_ref[...],
                     preferred_element_type=jnp.float32)            # (T*B, 4*HP) f32

    whh = whh_ref[...]                                              # (HP, 4*HP) bf16

    h = jnp.zeros((B, HP), jnp.float32)
    c = jnp.zeros((B, HP), jnp.float32)

    # Unrolled LSTM recurrence; seq_len is small & static (T=8).
    # (If T ever grows beyond ~16, switch to lax.fori_loop(..., unroll=4).)
    for t in range(seq_len):
        gates = (x_proj[t * B:(t + 1) * B, :]
                 + jnp.dot(h.astype(jnp.bfloat16), whh,
                           preferred_element_type=jnp.float32))     # (B, 4*HP) f32
        # Lane-aligned 128-wide gate slices (gate order i, f, g, o).
        i_g = jax.nn.sigmoid(gates[:, 0 * HP:1 * HP])
        f_g = jax.nn.sigmoid(gates[:, 1 * HP:2 * HP])
        g_g = jnp.tanh(gates[:, 2 * HP:3 * HP])
        o_g = jax.nn.sigmoid(gates[:, 3 * HP:4 * HP])
        c = f_g * c + i_g * g_g
        h = o_g * jnp.tanh(c)
        # Pad lanes: gates=0 -> g=0, so c_pad,h_pad stay exactly 0; and padded
        # rows of whh/w1 are zero, so pad lanes can never reach real outputs.

    # --- fc1 + ReLU ----------------------------------------------------------
    z = jnp.dot(h.astype(jnp.bfloat16), w1_ref[...],
                preferred_element_type=jnp.float32) + b1_ref[...]   # (B, FC) f32
    z = jnp.maximum(z, 0.0)

    # --- Fused action/value heads (single MXU op, single lane-dense store) ---
    heads = jnp.dot(z.astype(jnp.bfloat16), wh_ref[...],
                    preferred_element_type=jnp.float32) + bh_ref[...]  # (B, HEADP)

    lane = jax.lax.broadcasted_iota(jnp.int32, heads.shape, 1)
    is_act = lane < N_ACT
    # Stable softmax over the 2 action logits only (masked max / sum).
    m = jnp.max(jnp.where(is_act, heads, -jnp.inf), axis=-1, keepdims=True)
    e = jnp.where(is_act, jnp.exp(heads - m), 0.0)
    probs = e / jnp.sum(e, axis=-1, keepdims=True)

    # cols 0:2 -> softmax probs, col 2 -> value, remaining pad cols -> 0.
    out_ref[...] = jnp.where(is_act, probs, heads)


def pack_params(params):
    """One-time host-side packing: pad H->HP, fuse heads, cast matmul weights to bf16."""
    def pad_gate_cols(w):                       # (K, 4H) -> (K, 4HP), zero pad per gate block
        blocks = [jnp.pad(w[:, g * H:(g + 1) * H], ((0, 0), (0, HP - H)))
                  for g in range(4)]
        return jnp.concatenate(blocks, axis=1)

    w_ih_p = pad_gate_cols(params["w_ih_t"]).astype(jnp.bfloat16)                    # (IN, 4HP)
    w_hh_p = jnp.pad(pad_gate_cols(params["w_hh_t"]),
                     ((0, HP - H), (0, 0))).astype(jnp.bfloat16)                     # (HP, 4HP)
    w1_p = jnp.pad(params["w1"], ((0, HP - H), (0, 0))).astype(jnp.bfloat16)         # (HP, FC)
    b1_p = params["b1"].reshape(1, FC).astype(jnp.float32)                           # (1, FC)

    w_heads = jnp.zeros((FC, HEADP), jnp.float32)
    w_heads = w_heads.at[:, :N_ACT].set(params["wa"])
    w_heads = w_heads.at[:, N_ACT:N_ACT + 1].set(params["wv"])
    b_heads = jnp.zeros((1, HEADP), jnp.float32)
    b_heads = b_heads.at[0, :N_ACT].set(params["ba"])
    b_heads = b_heads.at[0, N_ACT].set(params["bv"][0])

    return {"w_ih": w_ih_p, "w_hh": w_hh_p, "w1": w1_p, "b1": b1_p,
            "w_heads": w_heads.astype(jnp.bfloat16), "b_heads": b_heads}


def policy_forward(x, packed):
    B, T, _ = x.shape
    # Time-major flat input so each timestep is a contiguous sublane slice in-kernel.
    x_tm = jnp.transpose(x, (1, 0, 2)).reshape(T * B, IN)

    vmem = pl.BlockSpec(memory_space=pltpu.MemorySpace.VMEM)
    kernel = functools.partial(_policy_kernel, seq_len=T, batch=B)
    out = pl.pallas_call(
        kernel,
        out_shape=jax.ShapeDtypeStruct((B, HEADP), jnp.float32),
        in_specs=[vmem] * 7,
        out_specs=vmem,
    )(x_tm, packed["w_ih"], packed["w_hh"], packed["w1"], packed["b1"],
      packed["w_heads"], packed["b_heads"])

    action = out[:, :N_ACT]
    value = out[:, N_ACT:N_ACT + 1]
    return action, value


def policy_reference(x, params):
    """Pure-JAX f32 reference matching PyTorch semantics (for sanity check)."""
    B, T, _ = x.shape
    h = jnp.zeros((B, H), jnp.float32)
    c = jnp.zeros((B, H), jnp.float32)
    for t in range(T):
        gates = x[:, t, :] @ params["w_ih_t"] + h @ params["w_hh_t"]
        i_g = jax.nn.sigmoid(gates[:, 0 * H:1 * H])
        f_g = jax.nn.sigmoid(gates[:, 1 * H:2 * H])
        g_g = jnp.tanh(gates[:, 2 * H:3 * H])
        o_g = jax.nn.sigmoid(gates[:, 3 * H:4 * H])
        c = f_g * c + i_g * g_g
        h = o_g * jnp.tanh(c)
    z = jax.nn.relu(h @ params["w1"] + params["b1"])
    action = jax.nn.softmax(z @ params["wa"] + params["ba"], axis=-1)
    value = z @ params["wv"] + params["bv"]
    return action, value


def init_params(key):
    ks = jax.random.split(key, 8)
    u = lambda k, shape, bound: jax.random.uniform(k, shape, jnp.float32, -bound, bound)
    return {
        # nn.LSTM(2, 100, bias=False): weight_ih (4H, IN), weight_hh (4H, H); stored transposed.
        "w_ih_t": u(ks[0], (IN, 4 * H), 1.0 / math.sqrt(H)),
        "w_hh_t": u(ks[1], (H, 4 * H), 1.0 / math.sqrt(H)),
        # fc1: Linear(100, 128)
        "w1": u(ks[2], (H, FC), 1.0 / math.sqrt(H)),
        "b1": u(ks[3], (FC,), 1.0 / math.sqrt(H)),
        # action_head: Linear(128, 2)
        "wa": u(ks[4], (FC, N_ACT), 1.0 / math.sqrt(FC)),
        "ba": u(ks[5], (N_ACT,), 1.0 / math.sqrt(FC)),
        # value_head: Linear(128, 1)
        "wv": u(ks[6], (FC, 1), 1.0 / math.sqrt(FC)),
        "bv": u(ks[7], (1,), 1.0 / math.sqrt(FC)),
    }


if __name__ == "__main__":
    key = jax.random.PRNGKey(0)
    pkey, xkey = jax.random.split(key)
    params = init_params(pkey)
    packed = pack_params(params)   # one-time host-side padding / bf16 cast / head fusion

    B, T = 1, 8  # the original module's hidden state implies batch=1
    x = jax.random.normal(xkey, (B, T, IN), dtype=jnp.float32)

    action, value = policy_forward(x, packed)
    jax.block_until_ready((action, value))

    action_ref, value_ref = policy_reference(x, params)
    assert action.shape == (B, N_ACT) and value.shape == (B, 1)
    # bf16 MXU operands (f32 accumulation) introduce ~1e-3-level deviation vs the
    # pure-f32 reference; tolerance is set accordingly.
    assert jnp.allclose(action, action_ref, atol=1e-2, rtol=1e-2)
    assert jnp.allclose(value, value_ref, atol=1e-2, rtol=1e-2)
    assert jnp.allclose(jnp.sum(action, axis=-1), 1.0, atol=1e-5)

    print("KERNEL_OK")
</pallas_src>

<mosaic_0001>
module attributes {stable_mosaic.version = 11 : i64} {
  func.func @_policy_kernel(%arg0: memref<8x2xf32, #tpu.memory_space<vmem>>, %arg1: memref<2x512xbf16, #tpu.memory_space<vmem>>, %arg2: memref<128x512xbf16, #tpu.memory_space<vmem>>, %arg3: memref<128x128xbf16, #tpu.memory_space<vmem>>, %arg4: memref<1x128xf32, #tpu.memory_space<vmem>>, %arg5: memref<128x128xbf16, #tpu.memory_space<vmem>>, %arg6: memref<1x128xf32, #tpu.memory_space<vmem>>, %arg7: memref<1x128xf32, #tpu.memory_space<vmem>>) attributes {dimension_semantics = [], scalar_prefetch = 0 : i64, scratch_operands = 0 : i64, tpu.core_type = #tpu.core_type<tc>} {
    %c0 = arith.constant 0 : index
    %c0_0 = arith.constant 0 : index
    %0 = vector.load %arg0[%c0, %c0_0] : memref<8x2xf32, #tpu.memory_space<vmem>>, vector<8x2xf32>
    %1 = arith.truncf %0 : vector<8x2xf32> to vector<8x2xbf16>
    %c0_1 = arith.constant 0 : index
    %c0_2 = arith.constant 0 : index
    %2 = vector.load %arg1[%c0_1, %c0_2] : memref<2x512xbf16, #tpu.memory_space<vmem>>, vector<2x512xbf16>
    %cst = arith.constant dense<0.000000e+00> : vector<8x512xf32>
    %3 = tpu.matmul %1, %2, %cst {dimension_numbers = #tpu.dot_dimension_numbers<[1], [0], [0], [1], [0, 0, 1, 1], [], []>} : vector<8x2xbf16>, vector<2x512xbf16>, vector<8x512xf32> -> vector<8x512xf32>
    %c0_3 = arith.constant 0 : index
    %c0_4 = arith.constant 0 : index
    %4 = vector.load %arg2[%c0_3, %c0_4] : memref<128x512xbf16, #tpu.memory_space<vmem>>, vector<128x512xbf16>
    %cst_5 = arith.constant 0.000000e+00 : f32
    %5 = vector.broadcast %cst_5 : f32 to vector<1x128xf32>
    %cst_6 = arith.constant 0.000000e+00 : f32
    %6 = vector.broadcast %cst_6 : f32 to vector<1x128xf32>
    %7 = vector.extract_strided_slice %3 {offsets = [0, 0], sizes = [1, 512], strides = [1, 1]} : vector<8x512xf32> to vector<1x512xf32>
    %8 = arith.truncf %5 : vector<1x128xf32> to vector<1x128xbf16>
    %cst_7 = arith.constant dense<0.000000e+00> : vector<1x512xf32>
    %9 = tpu.matmul %8, %4, %cst_7 {dimension_numbers = #tpu.dot_dimension_numbers<[1], [0], [0], [1], [0, 0, 1, 1], [], []>} : vector<1x128xbf16>, vector<128x512xbf16>, vector<1x512xf32> -> vector<1x512xf32>
    %10 = arith.addf %7, %9 : vector<1x512xf32>
    %11 = vector.extract_strided_slice %10 {offsets = [0, 0], sizes = [1, 128], strides = [1, 1]} : vector<1x512xf32> to vector<1x128xf32>
    %12 = arith.negf %11 : vector<1x128xf32>
    %13 = math.exp %12 : vector<1x128xf32>
    %cst_8 = arith.constant 1.000000e+00 : f32
    %14 = vector.broadcast %cst_8 : f32 to vector<1x128xf32>
    %15 = arith.addf %14, %13 : vector<1x128xf32>
    %16 = arith.divf %14, %15 : vector<1x128xf32>
    %17 = vector.extract_strided_slice %10 {offsets = [0, 128], sizes = [1, 128], strides = [1, 1]} : vector<1x512xf32> to vector<1x128xf32>
    %18 = arith.negf %17 : vector<1x128xf32>
    %19 = math.exp %18 : vector<1x128xf32>
    %cst_9 = arith.constant 1.000000e+00 : f32
    %20 = vector.broadcast %cst_9 : f32 to vector<1x128xf32>
    %21 = arith.addf %20, %19 : vector<1x128xf32>
    %22 = arith.divf %20, %21 : vector<1x128xf32>
    %23 = vector.extract_strided_slice %10 {offsets = [0, 256], sizes = [1, 128], strides = [1, 1]} : vector<1x512xf32> to vector<1x128xf32>
    %24 = math.tanh %23 : vector<1x128xf32>
    %25 = vector.extract_strided_slice %10 {offsets = [0, 384], sizes = [1, 128], strides = [1, 1]} : vector<1x512xf32> to vector<1x128xf32>
    %26 = arith.negf %25 : vector<1x128xf32>
    %27 = math.exp %26 : vector<1x128xf32>
    %cst_10 = arith.constant 1.000000e+00 : f32
    %28 = vector.broadcast %cst_10 : f32 to vector<1x128xf32>
    %29 = arith.addf %28, %27 : vector<1x128xf32>
    %30 = arith.divf %28, %29 : vector<1x128xf32>
    %31 = arith.mulf %22, %6 : vector<1x128xf32>
    %32 = arith.mulf %16, %24 : vector<1x128xf32>
    %33 = arith.addf %31, %32 : vector<1x128xf32>
    %34 = math.tanh %33 : vector<1x128xf32>
    %35 = arith.mulf %30, %34 : vector<1x128xf32>
    %36 = vector.extract_strided_slice %3 {offsets = [1, 0], sizes = [1, 512], strides = [1, 1]} : vector<8x512xf32> to vector<1x512xf32>
    %37 = arith.truncf %35 : vector<1x128xf32> to vector<1x128xbf16>
    %cst_11 = arith.constant dense<0.000000e+00> : vector<1x512xf32>
    %38 = tpu.matmul %37, %4, %cst_11 {dimension_numbers = #tpu.dot_dimension_numbers<[1], [0], [0], [1], [0, 0, 1, 1], [], []>} : vector<1x128xbf16>, vector<128x512xbf16>, vector<1x512xf32> -> vector<1x512xf32>
    %39 = arith.addf %36, %38 : vector<1x512xf32>
    %40 = vector.extract_strided_slice %39 {offsets = [0, 0], sizes = [1, 128], strides = [1, 1]} : vector<1x512xf32> to vector<1x128xf32>
    %41 = arith.negf %40 : vector<1x128xf32>
    %42 = math.exp %41 : vector<1x128xf32>
    %cst_12 = arith.constant 1.000000e+00 : f32
    %43 = vector.broadcast %cst_12 : f32 to vector<1x128xf32>
    %44 = arith.addf %43, %42 : vector<1x128xf32>
    %45 = arith.divf %43, %44 : vector<1x128xf32>
    %46 = vector.extract_strided_slice %39 {offsets = [0, 128], sizes = [1, 128], strides = [1, 1]} : vector<1x512xf32> to vector<1x128xf32>
    %47 = arith.negf %46 : vector<1x128xf32>
    %48 = math.exp %47 : vector<1x128xf32>
    %cst_13 = arith.constant 1.000000e+00 : f32
    %49 = vector.broadcast %cst_13 : f32 to vector<1x128xf32>
    %50 = arith.addf %49, %48 : vector<1x128xf32>
    %51 = arith.divf %49, %50 : vector<1x128xf32>
    %52 = vector.extract_strided_slice %39 {offsets = [0, 256], sizes = [1, 128], strides = [1, 1]} : vector<1x512xf32> to vector<1x128xf32>
    %53 = math.tanh %52 : vector<1x128xf32>
    %54 = vector.extract_strided_slice %39 {offsets = [0, 384], sizes = [1, 128], strides = [1, 1]} : vector<1x512xf32> to vector<1x128xf32>
    %55 = arith.negf %54 : vector<1x128xf32>
    %56 = math.exp %55 : vector<1x128xf32>
    %cst_14 = arith.constant 1.000000e+00 : f32
    %57 = vector.broadcast %cst_14 : f32 to vector<1x128xf32>
    %58 = arith.addf %57, %56 : vector<1x128xf32>
    %59 = arith.divf %57, %58 : vector<1x128xf32>
    %60 = arith.mulf %51, %33 : vector<1x128xf32>
    %61 = arith.mulf %45, %53 : vector<1x128xf32>
    %62 = arith.addf %60, %61 : vector<1x128xf32>
    %63 = math.tanh %62 : vector<1x128xf32>
    %64 = arith.mulf %59, %63 : vector<1x128xf32>
    %65 = vector.extract_strided_slice %3 {offsets = [2, 0], sizes = [1, 512], strides = [1, 1]} : vector<8x512xf32> to vector<1x512xf32>
    %66 = arith.truncf %64 : vector<1x128xf32> to vector<1x128xbf16>
    %cst_15 = arith.constant dense<0.000000e+00> : vector<1x512xf32>
    %67 = tpu.matmul %66, %4, %cst_15 {dimension_numbers = #tpu.dot_dimension_numbers<[1], [0], [0], [1], [0, 0, 1, 1], [], []>} : vector<1x128xbf16>, vector<128x512xbf16>, vector<1x512xf32> -> vector<1x512xf32>
    %68 = arith.addf %65, %67 : vector<1x512xf32>
    %69 = vector.extract_strided_slice %68 {offsets = [0, 0], sizes = [1, 128], strides = [1, 1]} : vector<1x512xf32> to vector<1x128xf32>
    %70 = arith.negf %69 : vector<1x128xf32>
    %71 = math.exp %70 : vector<1x128xf32>
    %cst_16 = arith.constant 1.000000e+00 : f32
    %72 = vector.broadcast %cst_16 : f32 to vector<1x128xf32>
    %73 = arith.addf %72, %71 : vector<1x128xf32>
    %74 = arith.divf %72, %73 : vector<1x128xf32>
    %75 = vector.extract_strided_slice %68 {offsets = [0, 128], sizes = [1, 128], strides = [1, 1]} : vector<1x512xf32> to vector<1x128xf32>
    %76 = arith.negf %75 : vector<1x128xf32>
    %77 = math.exp %76 : vector<1x128xf32>
    %cst_17 = arith.constant 1.000000e+00 : f32
    %78 = vector.broadcast %cst_17 : f32 to vector<1x128xf32>
    %79 = arith.addf %78, %77 : vector<1x128xf32>
    %80 = arith.divf %78, %79 : vector<1x128xf32>
    %81 = vector.extract_strided_slice %68 {offsets = [0, 256], sizes = [1, 128], strides = [1, 1]} : vector<1x512xf32> to vector<1x128xf32>
    %82 = math.tanh %81 : vector<1x128xf32>
    %83 = vector.extract_strided_slice %68 {offsets = [0, 384], sizes = [1, 128], strides = [1, 1]} : vector<1x512xf32> to vector<1x128xf32>
    %84 = arith.negf %83 : vector<1x128xf32>
    %85 = math.exp %84 : vector<1x128xf32>
    %cst_18 = arith.constant 1.000000e+00 : f32
    %86 = vector.broadcast %cst_18 : f32 to vector<1x128xf32>
    %87 = arith.addf %86, %85 : vector<1x128xf32>
    %88 = arith.divf %86, %87 : vector<1x128xf32>
    %89 = arith.mulf %80, %62 : vector<1x128xf32>
    %90 = arith.mulf %74, %82 : vector<1x128xf32>
    %91 = arith.addf %89, %90 : vector<1x128xf32>
    %92 = math.tanh %91 : vector<1x128xf32>
    %93 = arith.mulf %88, %92 : vector<1x128xf32>
    %94 = vector.extract_strided_slice %3 {offsets = [3, 0], sizes = [1, 512], strides = [1, 1]} : vector<8x512xf32> to vector<1x512xf32>
    %95 = arith.truncf %93 : vector<1x128xf32> to vector<1x128xbf16>
    %cst_19 = arith.constant dense<0.000000e+00> : vector<1x512xf32>
    %96 = tpu.matmul %95, %4, %cst_19 {dimension_numbers = #tpu.dot_dimension_numbers<[1], [0], [0], [1], [0, 0, 1, 1], [], []>} : vector<1x128xbf16>, vector<128x512xbf16>, vector<1x512xf32> -> vector<1x512xf32>
    %97 = arith.addf %94, %96 : vector<1x512xf32>
    %98 = vector.extract_strided_slice %97 {offsets = [0, 0], sizes = [1, 128], strides = [1, 1]} : vector<1x512xf32> to vector<1x128xf32>
    %99 = arith.negf %98 : vector<1x128xf32>
    %100 = math.exp %99 : vector<1x128xf32>
    %cst_20 = arith.constant 1.000000e+00 : f32
    %101 = vector.broadcast %cst_20 : f32 to vector<1x128xf32>
    %102 = arith.addf %101, %100 : vector<1x128xf32>
    %103 = arith.divf %101, %102 : vector<1x128xf32>
    %104 = vector.extract_strided_slice %97 {offsets = [0, 128], sizes = [1, 128], strides = [1, 1]} : vector<1x512xf32> to vector<1x128xf32>
    %105 = arith.negf %104 : vector<1x128xf32>
    %106 = math.exp %105 : vector<1x128xf32>
    %cst_21 = arith.constant 1.000000e+00 : f32
    %107 = vector.broadcast %cst_21 : f32 to vector<1x128xf32>
    %108 = arith.addf %107, %106 : vector<1x128xf32>
    %109 = arith.divf %107, %108 : vector<1x128xf32>
    %110 = vector.extract_strided_slice %97 {offsets = [0, 256], sizes = [1, 128], strides = [1, 1]} : vector<1x512xf32> to vector<1x128xf32>
    %111 = math.tanh %110 : vector<1x128xf32>
    %112 = vector.extract_strided_slice %97 {offsets = [0, 384], sizes = [1, 128], strides = [1, 1]} : vector<1x512xf32> to vector<1x128xf32>
    %113 = arith.negf %112 : vector<1x128xf32>
    %114 = math.exp %113 : vector<1x128xf32>
    %cst_22 = arith.constant 1.000000e+00 : f32
    %115 = vector.broadcast %cst_22 : f32 to vector<1x128xf32>
    %116 = arith.addf %115, %114 : vector<1x128xf32>
    %117 = arith.divf %115, %116 : vector<1x128xf32>
    %118 = arith.mulf %109, %91 : vector<1x128xf32>
    %119 = arith.mulf %103, %111 : vector<1x128xf32>
    %120 = arith.addf %118, %119 : vector<1x128xf32>
    %121 = math.tanh %120 : vector<1x128xf32>
    %122 = arith.mulf %117, %121 : vector<1x128xf32>
    %123 = vector.extract_strided_slice %3 {offsets = [4, 0], sizes = [1, 512], strides = [1, 1]} : vector<8x512xf32> to vector<1x512xf32>
    %124 = arith.truncf %122 : vector<1x128xf32> to vector<1x128xbf16>
    %cst_23 = arith.constant dense<0.000000e+00> : vector<1x512xf32>
    %125 = tpu.matmul %124, %4, %cst_23 {dimension_numbers = #tpu.dot_dimension_numbers<[1], [0], [0], [1], [0, 0, 1, 1], [], []>} : vector<1x128xbf16>, vector<128x512xbf16>, vector<1x512xf32> -> vector<1x512xf32>
    %126 = arith.addf %123, %125 : vector<1x512xf32>
    %127 = vector.extract_strided_slice %126 {offsets = [0, 0], sizes = [1, 128], strides = [1, 1]} : vector<1x512xf32> to vector<1x128xf32>
    %128 = arith.negf %127 : vector<1x128xf32>
    %129 = math.exp %128 : vector<1x128xf32>
    %cst_24 = arith.constant 1.000000e+00 : f32
    %130 = vector.broadcast %cst_24 : f32 to vector<1x128xf32>
    %131 = arith.addf %130, %129 : vector<1x128xf32>
    %132 = arith.divf %130, %131 : vector<1x128xf32>
    %133 = vector.extract_strided_slice %126 {offsets = [0, 128], sizes = [1, 128], strides = [1, 1]} : vector<1x512xf32> to vector<1x128xf32>
    %134 = arith.negf %133 : vector<1x128xf32>
    %135 = math.exp %134 : vector<1x128xf32>
    %cst_25 = arith.constant 1.000000e+00 : f32
    %136 = vector.broadcast %cst_25 : f32 to vector<1x128xf32>
    %137 = arith.addf %136, %135 : vector<1x128xf32>
    %138 = arith.divf %136, %137 : vector<1x128xf32>
    %139 = vector.extract_strided_slice %126 {offsets = [0, 256], sizes = [1, 128], strides = [1, 1]} : vector<1x512xf32> to vector<1x128xf32>
    %140 = math.tanh %139 : vector<1x128xf32>
    %141 = vector.extract_strided_slice %126 {offsets = [0, 384], sizes = [1, 128], strides = [1, 1]} : vector<1x512xf32> to vector<1x128xf32>
    %142 = arith.negf %141 : vector<1x128xf32>
    %143 = math.exp %142 : vector<1x128xf32>
    %cst_26 = arith.constant 1.000000e+00 : f32
    %144 = vector.broadcast %cst_26 : f32 to vector<1x128xf32>
    %145 = arith.addf %144, %143 : vector<1x128xf32>
    %146 = arith.divf %144, %145 : vector<1x128xf32>
    %147 = arith.mulf %138, %120 : vector<1x128xf32>
    %148 = arith.mulf %132, %140 : vector<1x128xf32>
    %149 = arith.addf %147, %148 : vector<1x128xf32>
    %150 = math.tanh %149 : vector<1x128xf32>
    %151 = arith.mulf %146, %150 : vector<1x128xf32>
    %152 = vector.extract_strided_slice %3 {offsets = [5, 0], sizes = [1, 512], strides = [1, 1]} : vector<8x512xf32> to vector<1x512xf32>
    %153 = arith.truncf %151 : vector<1x128xf32> to vector<1x128xbf16>
    %cst_27 = arith.constant dense<0.000000e+00> : vector<1x512xf32>
    %154 = tpu.matmul %153, %4, %cst_27 {dimension_numbers = #tpu.dot_dimension_numbers<[1], [0], [0], [1], [0, 0, 1, 1], [], []>} : vector<1x128xbf16>, vector<128x512xbf16>, vector<1x512xf32> -> vector<1x512xf32>
    %155 = arith.addf %152, %154 : vector<1x512xf32>
    %156 = vector.extract_strided_slice %155 {offsets = [0, 0], sizes = [1, 128], strides = [1, 1]} : vector<1x512xf32> to vector<1x128xf32>
    %157 = arith.negf %156 : vector<1x128xf32>
    %158 = math.exp %157 : vector<1x128xf32>
    %cst_28 = arith.constant 1.000000e+00 : f32
    %159 = vector.broadcast %cst_28 : f32 to vector<1x128xf32>
    %160 = arith.addf %159, %158 : vector<1x128xf32>
    %161 = arith.divf %159, %160 : vector<1x128xf32>
    %162 = vector.extract_strided_slice %155 {offsets = [0, 128], sizes = [1, 128], strides = [1, 1]} : vector<1x512xf32> to vector<1x128xf32>
    %163 = arith.negf %162 : vector<1x128xf32>
    %164 = math.exp %163 : vector<1x128xf32>
    %cst_29 = arith.constant 1.000000e+00 : f32
    %165 = vector.broadcast %cst_29 : f32 to vector<1x128xf32>
    %166 = arith.addf %165, %164 : vector<1x128xf32>
    %167 = arith.divf %165, %166 : vector<1x128xf32>
    %168 = vector.extract_strided_slice %155 {offsets = [0, 256], sizes = [1, 128], strides = [1, 1]} : vector<1x512xf32> to vector<1x128xf32>
    %169 = math.tanh %168 : vector<1x128xf32>
    %170 = vector.extract_strided_slice %155 {offsets = [0, 384], sizes = [1, 128], strides = [1, 1]} : vector<1x512xf32> to vector<1x128xf32>
    %171 = arith.negf %170 : vector<1x128xf32>
    %172 = math.exp %171 : vector<1x128xf32>
    %cst_30 = arith.constant 1.000000e+00 : f32
    %173 = vector.broadcast %cst_30 : f32 to vector<1x128xf32>
    %174 = arith.addf %173, %172 : vector<1x128xf32>
    %175 = arith.divf %173, %174 : vector<1x128xf32>
    %176 = arith.mulf %167, %149 : vector<1x128xf32>
    %177 = arith.mulf %161, %169 : vector<1x128xf32>
    %178 = arith.addf %176, %177 : vector<1x128xf32>
    %179 = math.tanh %178 : vector<1x128xf32>
    %180 = arith.mulf %175, %179 : vector<1x128xf32>
    %181 = vector.extract_strided_slice %3 {offsets = [6, 0], sizes = [1, 512], strides = [1, 1]} : vector<8x512xf32> to vector<1x512xf32>
    %182 = arith.truncf %180 : vector<1x128xf32> to vector<1x128xbf16>
    %cst_31 = arith.constant dense<0.000000e+00> : vector<1x512xf32>
    %183 = tpu.matmul %182, %4, %cst_31 {dimension_numbers = #tpu.dot_dimension_numbers<[1], [0], [0], [1], [0, 0, 1, 1], [], []>} : vector<1x128xbf16>, vector<128x512xbf16>, vector<1x512xf32> -> vector<1x512xf32>
    %184 = arith.addf %181, %183 : vector<1x512xf32>
    %185 = vector.extract_strided_slice %184 {offsets = [0, 0], sizes = [1, 128], strides = [1, 1]} : vector<1x512xf32> to vector<1x128xf32>
    %186 = arith.negf %185 : vector<1x128xf32>
    %187 = math.exp %186 : vector<1x128xf32>
    %cst_32 = arith.constant 1.000000e+00 : f32
    %188 = vector.broadcast %cst_32 : f32 to vector<1x128xf32>
    %189 = arith.addf %188, %187 : vector<1x128xf32>
    %190 = arith.divf %188, %189 : vector<1x128xf32>
    %191 = vector.extract_strided_slice %184 {offsets = [0, 128], sizes = [1, 128], strides = [1, 1]} : vector<1x512xf32> to vector<1x128xf32>
    %192 = arith.negf %191 : vector<1x128xf32>
    %193 = math.exp %192 : vector<1x128xf32>
    %cst_33 = arith.constant 1.000000e+00 : f32
    %194 = vector.broadcast %cst_33 : f32 to vector<1x128xf32>
    %195 = arith.addf %194, %193 : vector<1x128xf32>
    %196 = arith.divf %194, %195 : vector<1x128xf32>
    %197 = vector.extract_strided_slice %184 {offsets = [0, 256], sizes = [1, 128], strides = [1, 1]} : vector<1x512xf32> to vector<1x128xf32>
    %198 = math.tanh %197 : vector<1x128xf32>
    %199 = vector.extract_strided_slice %184 {offsets = [0, 384], sizes = [1, 128], strides = [1, 1]} : vector<1x512xf32> to vector<1x128xf32>
    %200 = arith.negf %199 : vector<1x128xf32>
    %201 = math.exp %200 : vector<1x128xf32>
    %cst_34 = arith.constant 1.000000e+00 : f32
    %202 = vector.broadcast %cst_34 : f32 to vector<1x128xf32>
    %203 = arith.addf %202, %201 : vector<1x128xf32>
    %204 = arith.divf %202, %203 : vector<1x128xf32>
    %205 = arith.mulf %196, %178 : vector<1x128xf32>
    %206 = arith.mulf %190, %198 : vector<1x128xf32>
    %207 = arith.addf %205, %206 : vector<1x128xf32>
    %208 = math.tanh %207 : vector<1x128xf32>
    %209 = arith.mulf %204, %208 : vector<1x128xf32>
    %210 = vector.extract_strided_slice %3 {offsets = [7, 0], sizes = [1, 512], strides = [1, 1]} : vector<8x512xf32> to vector<1x512xf32>
    %211 = arith.truncf %209 : vector<1x128xf32> to vector<1x128xbf16>
    %cst_35 = arith.constant dense<0.000000e+00> : vector<1x512xf32>
    %212 = tpu.matmul %211, %4, %cst_35 {dimension_numbers = #tpu.dot_dimension_numbers<[1], [0], [0], [1], [0, 0, 1, 1], [], []>} : vector<1x128xbf16>, vector<128x512xbf16>, vector<1x512xf32> -> vector<1x512xf32>
    %213 = arith.addf %210, %212 : vector<1x512xf32>
    %214 = vector.extract_strided_slice %213 {offsets = [0, 0], sizes = [1, 128], strides = [1, 1]} : vector<1x512xf32> to vector<1x128xf32>
    %215 = arith.negf %214 : vector<1x128xf32>
    %216 = math.exp %215 : vector<1x128xf32>
    %cst_36 = arith.constant 1.000000e+00 : f32
    %217 = vector.broadcast %cst_36 : f32 to vector<1x128xf32>
    %218 = arith.addf %217, %216 : vector<1x128xf32>
    %219 = arith.divf %217, %218 : vector<1x128xf32>
    %220 = vector.extract_strided_slice %213 {offsets = [0, 128], sizes = [1, 128], strides = [1, 1]} : vector<1x512xf32> to vector<1x128xf32>
    %221 = arith.negf %220 : vector<1x128xf32>
    %222 = math.exp %221 : vector<1x128xf32>
    %cst_37 = arith.constant 1.000000e+00 : f32
    %223 = vector.broadcast %cst_37 : f32 to vector<1x128xf32>
    %224 = arith.addf %223, %222 : vector<1x128xf32>
    %225 = arith.divf %223, %224 : vector<1x128xf32>
    %226 = vector.extract_strided_slice %213 {offsets = [0, 256], sizes = [1, 128], strides = [1, 1]} : vector<1x512xf32> to vector<1x128xf32>
    %227 = math.tanh %226 : vector<1x128xf32>
    %228 = vector.extract_strided_slice %213 {offsets = [0, 384], sizes = [1, 128], strides = [1, 1]} : vector<1x512xf32> to vector<1x128xf32>
    %229 = arith.negf %228 : vector<1x128xf32>
    %230 = math.exp %229 : vector<1x128xf32>
    %cst_38 = arith.constant 1.000000e+00 : f32
    %231 = vector.broadcast %cst_38 : f32 to vector<1x128xf32>
    %232 = arith.addf %231, %230 : vector<1x128xf32>
    %233 = arith.divf %231, %232 : vector<1x128xf32>
    %234 = arith.mulf %225, %207 : vector<1x128xf32>
    %235 = arith.mulf %219, %227 : vector<1x128xf32>
    %236 = arith.addf %234, %235 : vector<1x128xf32>
    %237 = math.tanh %236 : vector<1x128xf32>
    %238 = arith.mulf %233, %237 : vector<1x128xf32>
    %239 = arith.truncf %238 : vector<1x128xf32> to vector<1x128xbf16>
    %c0_39 = arith.constant 0 : index
    %c0_40 = arith.constant 0 : index
    %240 = vector.load %arg3[%c0_39, %c0_40] : memref<128x128xbf16, #tpu.memory_space<vmem>>, vector<128x128xbf16>
    %cst_41 = arith.constant dense<0.000000e+00> : vector<1x128xf32>
    %241 = tpu.matmul %239, %240, %cst_41 {dimension_numbers = #tpu.dot_dimension_numbers<[1], [0], [0], [1], [0, 0, 1, 1], [], []>} : vector<1x128xbf16>, vector<128x128xbf16>, vector<1x128xf32> -> vector<1x128xf32>
    %c0_42 = arith.constant 0 : index
    %c0_43 = arith.constant 0 : index
    %242 = vector.load %arg4[%c0_42, %c0_43] : memref<1x128xf32, #tpu.memory_space<vmem>>, vector<1x128xf32>
    %243 = arith.addf %241, %242 : vector<1x128xf32>
    %cst_44 = arith.constant 0.000000e+00 : f32
    %244 = vector.broadcast %cst_44 : f32 to vector<1x128xf32>
    %245 = arith.maximumf %243, %244 : vector<1x128xf32>
    %246 = arith.truncf %245 : vector<1x128xf32> to vector<1x128xbf16>
    %c0_45 = arith.constant 0 : index
    %c0_46 = arith.constant 0 : index
    %247 = vector.load %arg5[%c0_45, %c0_46] : memref<128x128xbf16, #tpu.memory_space<vmem>>, vector<128x128xbf16>
    %cst_47 = arith.constant dense<0.000000e+00> : vector<1x128xf32>
    %248 = tpu.matmul %246, %247, %cst_47 {dimension_numbers = #tpu.dot_dimension_numbers<[1], [0], [0], [1], [0, 0, 1, 1], [], []>} : vector<1x128xbf16>, vector<128x128xbf16>, vector<1x128xf32> -> vector<1x128xf32>
    %c0_48 = arith.constant 0 : index
    %c0_49 = arith.constant 0 : index
    %249 = vector.load %arg6[%c0_48, %c0_49] : memref<1x128xf32, #tpu.memory_space<vmem>>, vector<1x128xf32>
    %250 = arith.addf %248, %249 : vector<1x128xf32>
    %251 = tpu.iota {dimensions = array<i32: 1>} : vector<1x128xi32>
    %c2_i32 = arith.constant 2 : i32
    %252 = vector.broadcast %c2_i32 : i32 to vector<1x128xi32>
    %253 = arith.cmpi slt, %251, %252 : vector<1x128xi32>
    %cst_50 = arith.constant 0xFF800000 : f32
    %254 = vector.broadcast %cst_50 : f32 to vector<1x128xf32>
    %255 = arith.select %253, %250, %254 : vector<1x128xi1>, vector<1x128xf32>
    %cst_51 = arith.constant dense<0xFF800000> : vector<1xf32>
    %256 = vector.multi_reduction <maximumf>, %255, %cst_51 [1] : vector<1x128xf32> to vector<1xf32>
    %257 = vector.shape_cast %256 : vector<1xf32> to vector<1x1xf32>
    %258 = vector.broadcast %257 : vector<1x1xf32> to vector<1x128xf32>
    %259 = arith.subf %250, %258 : vector<1x128xf32>
    %260 = math.exp %259 : vector<1x128xf32>
    %cst_52 = arith.constant 0.000000e+00 : f32
    %261 = vector.broadcast %cst_52 : f32 to vector<1x128xf32>
    %262 = arith.select %253, %260, %261 : vector<1x128xi1>, vector<1x128xf32>
    %cst_53 = arith.constant dense<0.000000e+00> : vector<1xf32>
    %263 = vector.multi_reduction <add>, %262, %cst_53 [1] : vector<1x128xf32> to vector<1xf32>
    %264 = vector.shape_cast %263 : vector<1xf32> to vector<1x1xf32>
    %265 = vector.broadcast %264 : vector<1x1xf32> to vector<1x128xf32>
    %266 = arith.divf %262, %265 : vector<1x128xf32>
    %267 = arith.select %253, %266, %250 : vector<1x128xi1>, vector<1x128xf32>
    %c0_54 = arith.constant 0 : index
    %c0_55 = arith.constant 0 : index
    %268 = vector.load %arg7[%c0_54, %c0_55] : memref<1x128xf32, #tpu.memory_space<vmem>>, vector<1x128xf32>
    tpu.vector_store %arg7[%c0_54, %c0_55], %267 {strides = array<i32>} : memref<1x128xf32, #tpu.memory_space<vmem>>, vector<1x128xf32>,
    return
  }
}

</mosaic_0001>

<llo_original>
// kernel: tpu_custom_call.1
$region0: #{tpu_custom_call.1}
  #allocation0 [shape = 'u32[]', space=smem, size = 0x4, offset = 0x4, fixed_abs, tag = 'smem constant byte address 0x4 - core index']
  #allocation1 [shape = 'u32[144,128]{1,0:T(1,128)}', space=vmem, size = 0x12000, scoped, tag = 'internal scratch']
  %s0 = inlined_call_operand.vmem [shape: f32[8,2], index: 0, kind: input, shape index: {}]
  %s1 = inlined_call_operand.vmem [shape: bf16[2,512], index: 1, kind: input, shape index: {}]
  %s2 = inlined_call_operand.hbm [shape: bf16[128,512], index: 2, kind: input, shape index: {}]
  %s3 = inlined_call_operand.hbm [shape: bf16[128,128], index: 3, kind: input, shape index: {}]
  %s4 = inlined_call_operand.vmem [shape: f32[1,128], index: 4, kind: input, shape index: {}]
  %s5 = inlined_call_operand.hbm [shape: bf16[128,128], index: 5, kind: input, shape index: {}]
  %s6 = inlined_call_operand.vmem [shape: f32[1,128], index: 6, kind: input, shape index: {}]
  %s7 = inlined_call_operand.hbm [shape: f32[1,128], index: 7, kind: output, shape index: {}]
  %s8 = sld [smem:[#allocation0]]
  $region50: #{tpu_custom_call.1} parent=0
    _
  %s10 = ssub.s32 1, %s8
  %s11 = scalar_select 0, %s10, %s8
  $region1: #{tpu_custom_call.1} parent=0
    #allocation2 [shape = 'u8[131072]{0}', space=vmem, size = 0x20000, scoped, tag = 'input window, operand 2, single buffered']
    #allocation3 [shape = 's32[1]{0}', space=sflag, size = 0x4, scoped, tag = 'scoped memory for tpu_custom_call.1']
    #allocation4 [shape = 's32[1]{0}', space=sflag, size = 0x4, scoped, tag = 'scoped memory for tpu_custom_call.1']
    #allocation5 [shape = 'u8[32768]{0}', space=vmem, size = 0x8000, scoped, tag = 'input window, operand 3, single buffered']
    #allocation6 [shape = 's32[1]{0}', space=sflag, size = 0x4, scoped, tag = 'scoped memory for tpu_custom_call.1']
    #allocation7 [shape = 'u8[32768]{0}', space=vmem, size = 0x8000, scoped, tag = 'input window, operand 5, single buffered']
    #allocation8 [shape = 'u8[512]{0}', space=vmem, size = 0x400, scoped, tag = 'output window, operand 0, single buffered']
    %12 = vsyncpa [#allocation3], 0
    %13 = vsyncpa [#allocation6], 0
    %14 = vsyncpa [#allocation4], 0
    // Predicated region
    $region2: #{tpu_custom_call.1} parent=1 // pred_check
      _
    $region3: #{tpu_custom_call.1} parent=1 // pred_check_branch
      %16 = sbr.rel (0) target = $region5
    $region4: #{tpu_custom_call.1} parent=1 // pred_region
      _
    $region5: #{tpu_custom_call.1} parent=1 // pred_fallthru
      _
    // Predicated region
    $region6: #{tpu_custom_call.1} parent=1 // pred_check
      _
    $region7: #{tpu_custom_call.1} parent=1 // pred_check_branch
      %18 = sbr.rel (0) target = $region9
    $region8: #{tpu_custom_call.1} parent=1 // pred_region
      _
    $region9: #{tpu_custom_call.1} parent=1 // pred_fallthru
      _
    // Predicated region
    $region10: #{tpu_custom_call.1} parent=1 // pred_check
      _
    $region11: #{tpu_custom_call.1} parent=1 // pred_check_branch
      %20 = sbr.rel (0) target = $region13
    $region12: #{tpu_custom_call.1} parent=1 // pred_region
      %s22 = ssub.s32 4096, 4096
      %23 = vsyncadd [#allocation3], %s22
      %s24 = sshll.u32 [#allocation2], 4
      %s25 = int_to_ptr.vmem [resolvable:$true] %s24
      %30 = dma.hbm_to_vmem [thread:$0]  %s2, 4096, %s25, [#allocation3], 256, 256, 16
    $region13: #{tpu_custom_call.1} parent=1 // pred_fallthru
      _
    // Predicated region
    $region14: #{tpu_custom_call.1} parent=1 // pred_check
      _
    $region15: #{tpu_custom_call.1} parent=1 // pred_check_branch
      %32 = sbr.rel (0) target = $region17
    $region16: #{tpu_custom_call.1} parent=1 // pred_region
      %s34 = ssub.s32 1024, 1024
      %35 = vsyncadd [#allocation6], %s34
      %s36 = sshll.u32 [#allocation5], 4
      %s37 = int_to_ptr.vmem [resolvable:$true] %s36
      %42 = dma.hbm_to_vmem [thread:$0]  %s3, 1024, %s37, [#allocation6], 64, 64, 4
    $region17: #{tpu_custom_call.1} parent=1 // pred_fallthru
      _
    // Predicated region
    $region18: #{tpu_custom_call.1} parent=1 // pred_check
      _
    $region19: #{tpu_custom_call.1} parent=1 // pred_check_branch
      %44 = sbr.rel (0) target = $region21
    $region20: #{tpu_custom_call.1} parent=1 // pred_region
      _
    $region21: #{tpu_custom_call.1} parent=1 // pred_fallthru
      _
    // Predicated region
    $region22: #{tpu_custom_call.1} parent=1 // pred_check
      _
    $region23: #{tpu_custom_call.1} parent=1 // pred_check_branch
      %46 = sbr.rel (0) target = $region25
    $region24: #{tpu_custom_call.1} parent=1 // pred_region
      %s48 = ssub.s32 1024, 1024
      %49 = vsyncadd [#allocation6], %s48
      %s50 = sshll.u32 [#allocation7], 4
      %s51 = int_to_ptr.vmem [resolvable:$true] %s50
      %56 = dma.hbm_to_vmem [thread:$0]  %s5, 1024, %s51, [#allocation6], 64, 64, 4
    $region25: #{tpu_custom_call.1} parent=1 // pred_fallthru
      _
    // Predicated region
    $region26: #{tpu_custom_call.1} parent=1 // pred_check
      _
    $region27: #{tpu_custom_call.1} parent=1 // pred_check_branch
      %58 = sbr.rel (0) target = $region29
    $region28: #{tpu_custom_call.1} parent=1 // pred_region
      _
    $region29: #{tpu_custom_call.1} parent=1 // pred_fallthru
      _
    // Predicated region
    $region30: #{tpu_custom_call.1} parent=1 // pred_check
      _
    $region31: #{tpu_custom_call.1} parent=1 // pred_check_branch
      %60 = sbr.rel (0) target = $region33
    $region32: #{tpu_custom_call.1} parent=1 // pred_region
      %61 = dma.done [#allocation3], 4096
    $region33: #{tpu_custom_call.1} parent=1 // pred_fallthru
      _
    // Predicated region
    $region34: #{tpu_custom_call.1} parent=1 // pred_check
      _
    $region35: #{tpu_custom_call.1} parent=1 // pred_check_branch
      %63 = sbr.rel (0) target = $region37
    $region36: #{tpu_custom_call.1} parent=1 // pred_region
      %64 = dma.done [#allocation6], 1024
    $region37: #{tpu_custom_call.1} parent=1 // pred_fallthru
      _
    // Predicated region
    $region38: #{tpu_custom_call.1} parent=1 // pred_check
      _
    $region39: #{tpu_custom_call.1} parent=1 // pred_check_branch
      %66 = sbr.rel (0) target = $region41
    $region40: #{tpu_custom_call.1} parent=1 // pred_region
      %67 = dma.done [#allocation6], 1024
    $region41: #{tpu_custom_call.1} parent=1 // pred_fallthru
      _
    %v69 = vld [vmem:[%s0] sm:$0xff]
    %v70 = vpack.c.bf16 %v69, %v69
    %v71 = vld [vmem:[%s1] sm:$0xf]
    %v74 = vunpack.c.l.s4 1966171168
    %v75 = vunpack.c.0.s8 %v74
    %v76 = vlaneseq
    %v77 = vshrl.u32 %v76, 7
    %v78 = vsub.s32 %v75, %v77
    %v79 = vrot.slane %v71, %v78
    %v80 = vcombine.high %v79, %v79
    %v82 = vunpack.c.l.s4 1966171168
    %v83 = vunpack.c.0.s8 %v82
    %v84 = vlaneseq
    %v85 = vshrl.u32 %v84, 7
    %v86 = vsub.s32 %v83, %v85
    %v87 = vrot.slane %v79, %v86
    %v89 = vunpack.c.l.s4 1966171168
    %v90 = vunpack.c.0.s8 %v89
    %v91 = vlaneseq
    %v92 = vshrl.u32 %v91, 7
    %v93 = vsub.s32 %v90, %v92
    %v94 = vrot.slane %v80, %v93
    %v95 = vcombine.high %v87, %v87
    %v96 = vcombine.high %v94, %v94
    %vm97 = vcmask 15360
    %v99 = vsel %vm97, %v70, 0
    %vm101 = vcmask 1040384
    %v103 = vsel %vm101, %v87, 0
    %v106 = vsel %vm101, %v94, 0
    %v109 = vsel %vm101, %v95, 0
    %v112 = vsel %vm101, %v96, 0
    %114 = vmatprep.subr.bf16.mxu0 %v106
    %115 = vmatpush1.bf16.msra.mxu0 %v103
    %116 = vmatprep.subr.bf16.mxu0 0
    %117 = vmatpush1.bf16.msra.mxu0 0
    %118 = vmatprep.subr.bf16.mxu0 0
    %119 = vmatpush1.bf16.msra.mxu0 0
    %120 = vmatprep.subr.bf16.mxu0 0
    %121 = vmatpush1.bf16.msra.mxu0 0
    %122 = vmatprep.subr.bf16.mxu0 0
    %123 = vmatpush1.bf16.msra.mxu0 0
    %124 = vmatprep.subr.bf16.mxu0 0
    %125 = vmatpush1.bf16.msra.mxu0 0
    %126 = vmatprep.subr.bf16.mxu0 0
    %127 = vmatpush1.bf16.msra.mxu0 0
    %128 = vmatprep.subr.bf16.mxu0 0
    %129 = vmatpush1.bf16.msra.mxu0 0
    %130 = vmatprep.subr.bf16.mxu0 0
    %131 = vmatpush1.bf16.msra.mxu0 0
    %132 = vmatprep.subr.bf16.mxu0 0
    %133 = vmatpush1.bf16.msra.mxu0 0
    %134 = vmatprep.subr.bf16.mxu0 0
    %135 = vmatpush1.bf16.msra.mxu0 0
    %136 = vmatprep.subr.bf16.mxu0 0
    %137 = vmatpush1.bf16.msra.mxu0 0
    %138 = vmatprep.subr.bf16.mxu0 0
    %139 = vmatpush1.bf16.msra.mxu0 0
    %140 = vmatprep.subr.bf16.mxu0 0
    %141 = vmatpush1.bf16.msra.mxu0 0
    %142 = vmatprep.subr.bf16.mxu0 0
    %143 = vmatpush1.bf16.msra.mxu0 0
    %144 = vmatprep.subr.bf16.mxu0 0
    %145 = vmatpush1.bf16.msra.mxu0 0
    %146 = vmatprep.mubr.bf16.mxu0 0
    %147 = vmatmul.mubr.bf16.gmra.mrb[0].mxu0 %v99
    %v148 = vpop.f32.mrb[0].mxu0
    %v149 = vadd.f32 0.0, %v148
    %v150 = vpop.f32.mrb[0].mxu0
    %v151 = vadd.f32 0.0, %v150
    %v152 = vpop.f32.mrb[0].mxu0
    %v153 = vpop.f32.mrb[0].mxu0
    %154 = vdwg.mxu0
    %155 = vmatprep.subr.bf16.mxu0 %v112
    %156 = vmatpush1.bf16.msra.mxu0 %v109
    %157 = vmatprep.subr.bf16.mxu0 0
    %158 = vmatpush1.bf16.msra.mxu0 0
    %159 = vmatprep.subr.bf16.mxu0 0
    %160 = vmatpush1.bf16.msra.mxu0 0
    %161 = vmatprep.subr.bf16.mxu0 0
    %162 = vmatpush1.bf16.msra.mxu0 0
    %163 = vmatprep.subr.bf16.mxu0 0
    %164 = vmatpush1.bf16.msra.mxu0 0
    %165 = vmatprep.subr.bf16.mxu0 0
    %166 = vmatpush1.bf16.msra.mxu0 0
    %167 = vmatprep.subr.bf16.mxu0 0
    %168 = vmatpush1.bf16.msra.mxu0 0
    %169 = vmatprep.subr.bf16.mxu0 0
    %170 = vmatpush1.bf16.msra.mxu0 0
    %171 = vmatprep.subr.bf16.mxu0 0
    %172 = vmatpush1.bf16.msra.mxu0 0
    %173 = vmatprep.subr.bf16.mxu0 0
    %174 = vmatpush1.bf16.msra.mxu0 0
    %175 = vmatprep.subr.bf16.mxu0 0
    %176 = vmatpush1.bf16.msra.mxu0 0
    %177 = vmatprep.subr.bf16.mxu0 0
    %178 = vmatpush1.bf16.msra.mxu0 0
    %179 = vmatprep.subr.bf16.mxu0 0
    %180 = vmatpush1.bf16.msra.mxu0 0
    %181 = vmatprep.subr.bf16.mxu0 0
    %182 = vmatpush1.bf16.msra.mxu0 0
    %183 = vmatprep.subr.bf16.mxu0 0
    %184 = vmatpush1.bf16.msra.mxu0 0
    %185 = vmatprep.subr.bf16.mxu0 0
    %186 = vmatpush1.bf16.msra.mxu0 0
    %187 = vmatprep.mubr.bf16.mxu0 0
    %188 = vmatmul.mubr.bf16.gmra.mrb[0].mxu0 %v99
    %v189 = vpop.f32.mrb[0].mxu0
    %v190 = vadd.f32 0.0, %v189
    %v191 = vpop.f32.mrb[0].mxu0
    %v192 = vadd.f32 0.0, %v191
    %v193 = vpop.f32.mrb[0].mxu0
    %v194 = vpop.f32.mrb[0].mxu0
    %195 = vdwg.mxu0
    %v196 = vld [vmem:[#allocation2] sm:$0xff]
    %v197 = vld [vmem:[#allocation2 + $0x8] sm:$0xff]
    %v198 = vld [vmem:[#allocation2 + $0x10] sm:$0xff]
    %v199 = vld [vmem:[#allocation2 + $0x18] sm:$0xff]
    %v200 = vld [vmem:[#allocation2 + $0x20] sm:$0xff]
    %v201 = vld [vmem:[#allocation2 + $0x28] sm:$0xff]
    %v202 = vld [vmem:[#allocation2 + $0x30] sm:$0xff]
    %v203 = vld [vmem:[#allocation2 + $0x38] sm:$0xff]
    %v204 = vld [vmem:[#allocation2 + $0x40] sm:$0xff]
    %v205 = vld [vmem:[#allocation2 + $0x48] sm:$0xff]
    %v206 = vld [vmem:[#allocation2 + $0x50] sm:$0xff]
    %v207 = vld [vmem:[#allocation2 + $0x58] sm:$0xff]
    %v208 = vld [vmem:[#allocation2 + $0x60] sm:$0xff]
    %v209 = vld [vmem:[#allocation2 + $0x68] sm:$0xff]
    %v210 = vld [vmem:[#allocation2 + $0x70] sm:$0xff]
    %v211 = vld [vmem:[#allocation2 + $0x78] sm:$0xff]
    %v212 = vld [vmem:[#allocation2 + $0x80] sm:$0xff]
    %v213 = vld [vmem:[#allocation2 + $0x88] sm:$0xff]
    %v214 = vld [vmem:[#allocation2 + $0x90] sm:$0xff]
    %v215 = vld [vmem:[#allocation2 + $0x98] sm:$0xff]
    %v216 = vld [vmem:[#allocation2 + $0xa0] sm:$0xff]
    %v217 = vld [vmem:[#allocation2 + $0xa8] sm:$0xff]
    %v218 = vld [vmem:[#allocation2 + $0xb0] sm:$0xff]
    %v219 = vld [vmem:[#allocation2 + $0xb8] sm:$0xff]
    %v220 = vld [vmem:[#allocation2 + $0xc0] sm:$0xff]
    %v221 = vld [vmem:[#allocation2 + $0xc8] sm:$0xff]
    %v222 = vld [vmem:[#allocation2 + $0xd0] sm:$0xff]
    %v223 = vld [vmem:[#allocation2 + $0xd8] sm:$0xff]
    %v224 = vld [vmem:[#allocation2 + $0xe0] sm:$0xff]
    %v225 = vld [vmem:[#allocation2 + $0xe8] sm:$0xff]
    %v226 = vld [vmem:[#allocation2 + $0xf0] sm:$0xff]
    %v227 = vld [vmem:[#allocation2 + $0xf8] sm:$0xff]
    %v260 = vunpack.c.l.b16 %v196
    %v261 = vunpack.c.h.b16 %v196
    %v262 = vunpack.c.l.b16 %v197
    %v263 = vunpack.c.h.b16 %v197
    %v264 = vunpack.c.l.b16 %v198
    %v265 = vunpack.c.h.b16 %v198
    %v266 = vunpack.c.l.b16 %v199
    %v267 = vunpack.c.h.b16 %v199
    %v268 = vunpack.c.l.b16 %v200
    %v269 = vunpack.c.h.b16 %v200
    %v270 = vunpack.c.l.b16 %v201
    %v271 = vunpack.c.h.b16 %v201
    %v272 = vunpack.c.l.b16 %v202
    %v273 = vunpack.c.h.b16 %v202
    %v274 = vunpack.c.l.b16 %v203
    %v275 = vunpack.c.h.b16 %v203
    %v276 = vunpack.c.l.b16 %v204
    %v277 = vunpack.c.h.b16 %v204
    %v278 = vunpack.c.l.b16 %v205
    %v279 = vunpack.c.h.b16 %v205
    %v280 = vunpack.c.l.b16 %v206
    %v281 = vunpack.c.h.b16 %v206
    %v282 = vunpack.c.l.b16 %v207
    %v283 = vunpack.c.h.b16 %v207
    %v284 = vunpack.c.l.b16 %v208
    %v285 = vunpack.c.h.b16 %v208
    %v286 = vunpack.c.l.b16 %v209
    %v287 = vunpack.c.h.b16 %v209
    %v288 = vunpack.c.l.b16 %v210
    %v289 = vunpack.c.h.b16 %v210
    %v290 = vunpack.c.l.b16 %v211
    %v291 = vunpack.c.h.b16 %v211
    %v292 = vunpack.c.l.b16 %v212
    %v293 = vunpack.c.h.b16 %v212
    %v294 = vunpack.c.l.b16 %v213
    %v295 = vunpack.c.h.b16 %v213
    %v296 = vunpack.c.l.b16 %v214
    %v297 = vunpack.c.h.b16 %v214
    %v298 = vunpack.c.l.b16 %v215
    %v299 = vunpack.c.h.b16 %v215
    %v300 = vunpack.c.l.b16 %v216
    %v301 = vunpack.c.h.b16 %v216
    %v302 = vunpack.c.l.b16 %v217
    %v303 = vunpack.c.h.b16 %v217
    %v304 = vunpack.c.l.b16 %v218
    %v305 = vunpack.c.h.b16 %v218
    %v306 = vunpack.c.l.b16 %v219
    %v307 = vunpack.c.h.b16 %v219
    %v308 = vunpack.c.l.b16 %v220
    %v309 = vunpack.c.h.b16 %v220
    %v310 = vunpack.c.l.b16 %v221
    %v311 = vunpack.c.h.b16 %v221
    %v312 = vunpack.c.l.b16 %v222
    %v313 = vunpack.c.h.b16 %v222
    %v314 = vunpack.c.l.b16 %v223
    %v315 = vunpack.c.h.b16 %v223
    %v316 = vunpack.c.l.b16 %v224
    %v317 = vunpack.c.h.b16 %v224
    %v318 = vunpack.c.l.b16 %v225
    %v319 = vunpack.c.h.b16 %v225
    %v320 = vunpack.c.l.b16 %v226
    %v321 = vunpack.c.h.b16 %v226
    %v322 = vunpack.c.l.b16 %v227
    %v323 = vunpack.c.h.b16 %v227
    %v324 = vpack.c.b16 %v264, %v260
    %v325 = vpack.c.b16 %v265, %v261
    %v326 = vpack.c.b16 %v266, %v262
    %v327 = vpack.c.b16 %v267, %v263
    %v328 = vpack.c.b16 %v272, %v268
    %v329 = vpack.c.b16 %v273, %v269
    %v330 = vpack.c.b16 %v274, %v270
    %v331 = vpack.c.b16 %v275, %v271
    %v332 = vpack.c.b16 %v280, %v276
    %v333 = vpack.c.b16 %v281, %v277
    %v334 = vpack.c.b16 %v282, %v278
    %v335 = vpack.c.b16 %v283, %v279
    %v336 = vpack.c.b16 %v288, %v284
    %v337 = vpack.c.b16 %v289, %v285
    %v338 = vpack.c.b16 %v290, %v286
    %v339 = vpack.c.b16 %v291, %v287
    %v340 = vpack.c.b16 %v296, %v292
    %v341 = vpack.c.b16 %v297, %v293
    %v342 = vpack.c.b16 %v298, %v294
    %v343 = vpack.c.b16 %v299, %v295
    %v344 = vpack.c.b16 %v304, %v300
    %v345 = vpack.c.b16 %v305, %v301
    %v346 = vpack.c.b16 %v306, %v302
    %v347 = vpack.c.b16 %v307, %v303
    %v348 = vpack.c.b16 %v312, %v308
    %v349 = vpack.c.b16 %v313, %v309
    %v350 = vpack.c.b16 %v314, %v310
    %v351 = vpack.c.b16 %v315, %v311
    %v352 = vpack.c.b16 %v320, %v316
    %v353 = vpack.c.b16 %v321, %v317
    %v354 = vpack.c.b16 %v322, %v318
    %v355 = vpack.c.b16 %v323, %v319
    %388 = vmatprep.subr.bf16.mxu0 %v325
    %389 = vmatpush1.bf16.msra.mxu0 %v324
    %390 = vmatprep.subr.bf16.mxu0 %v329
    %391 = vmatpush1.bf16.msra.mxu0 %v328
    %392 = vmatprep.subr.bf16.mxu0 %v333
    %393 = vmatpush1.bf16.msra.mxu0 %v332
    %394 = vmatprep.subr.bf16.mxu0 %v337
    %395 = vmatpush1.bf16.msra.mxu0 %v336
    %396 = vmatprep.subr.bf16.mxu0 %v341
    %397 = vmatpush1.bf16.msra.mxu0 %v340
    %398 = vmatprep.subr.bf16.mxu0 %v345
    %399 = vmatpush1.bf16.msra.mxu0 %v344
    %400 = vmatprep.subr.bf16.mxu0 %v349
    %401 = vmatpush1.bf16.msra.mxu0 %v348
    %402 = vmatprep.subr.bf16.mxu0 %v353
    %403 = vmatpush1.bf16.msra.mxu0 %v352
    %404 = vmatprep.subr.bf16.mxu0 0
    %405 = vmatpush1.bf16.msra.mxu0 0
    %406 = vmatprep.subr.bf16.mxu0 0
    %407 = vmatpush1.bf16.msra.mxu0 0
    %408 = vmatprep.subr.bf16.mxu0 0
    %409 = vmatpush1.bf16.msra.mxu0 0
    %410 = vmatprep.subr.bf16.mxu0 0
    %411 = vmatpush1.bf16.msra.mxu0 0
    %412 = vmatprep.subr.bf16.mxu0 0
    %413 = vmatpush1.bf16.msra.mxu0 0
    %414 = vmatprep.subr.bf16.mxu0 0
    %415 = vmatpush1.bf16.msra.mxu0 0
    %416 = vmatprep.subr.bf16.mxu0 0
    %417 = vmatpush1.bf16.msra.mxu0 0
    %418 = vmatprep.subr.bf16.mxu0 0
    %419 = vmatpush1.bf16.msra.mxu0 0
    %420 = vmatprep.mubr.bf16.mxu0 0
    %421 = vmatmul.mubr.bf16.gmra.mrb[0].mxu0 0
    %v422 = vpop.f32.mrb[0].mxu0
    %v423 = vadd.f32 0.0, %v422
    %v424 = vpop.f32.mrb[0].mxu0
    %v425 = vadd.f32 0.0, %v424
    %v426 = vpop.f32.mrb[0].mxu0
    %v427 = vpop.f32.mrb[0].mxu0
    %428 = vdwg.mxu0
    %429 = vmatprep.subr.bf16.mxu0 %v327
    %430 = vmatpush1.bf16.msra.mxu0 %v326
    %431 = vmatprep.subr.bf16.mxu0 %v331
    %432 = vmatpush1.bf16.msra.mxu0 %v330
    %433 = vmatprep.subr.bf16.mxu0 %v335
    %434 = vmatpush1.bf16.msra.mxu0 %v334
    %435 = vmatprep.subr.bf16.mxu0 %v339
    %436 = vmatpush1.bf16.msra.mxu0 %v338
    %437 = vmatprep.subr.bf16.mxu0 %v343
    %438 = vmatpush1.bf16.msra.mxu0 %v342
    %439 = vmatprep.subr.bf16.mxu0 %v347
    %440 = vmatpush1.bf16.msra.mxu0 %v346
    %441 = vmatprep.subr.bf16.mxu0 %v351
    %442 = vmatpush1.bf16.msra.mxu0 %v350
    %443 = vmatprep.subr.bf16.mxu0 %v355
    %444 = vmatpush1.bf16.msra.mxu0 %v354
    %445 = vmatprep.subr.bf16.mxu0 0
    %446 = vmatpush1.bf16.msra.mxu0 0
    %447 = vmatprep.subr.bf16.mxu0 0
    %448 = vmatpush1.bf16.msra.mxu0 0
    %449 = vmatprep.subr.bf16.mxu0 0
    %450 = vmatpush1.bf16.msra.mxu0 0
    %451 = vmatprep.subr.bf16.mxu0 0
    %452 = vmatpush1.bf16.msra.mxu0 0
    %453 = vmatprep.subr.bf16.mxu0 0
    %454 = vmatpush1.bf16.msra.mxu0 0
    %455 = vmatprep.subr.bf16.mxu0 0
    %456 = vmatpush1.bf16.msra.mxu0 0
    %457 = vmatprep.subr.bf16.mxu0 0
    %458 = vmatpush1.bf16.msra.mxu0 0
    %459 = vmatprep.subr.bf16.mxu0 0
    %460 = vmatpush1.bf16.msra.mxu0 0
    %461 = vmatprep.mubr.bf16.mxu0 0
    %462 = vmatmul.mubr.bf16.gmra.mrb[0].mxu0 0
    %v463 = vpop.f32.mrb[0].mxu0
    %v464 = vadd.f32 0.0, %v463
    %v465 = vpop.f32.mrb[0].mxu0
    %v466 = vadd.f32 0.0, %v465
    %v467 = vpop.f32.mrb[0].mxu0
    %v468 = vpop.f32.mrb[0].mxu0
    %469 = vdwg.mxu0
    %v470 = vadd.f32 %v149, %v423
    %v471 = vadd.f32 %v151, %v425
    %v472 = vadd.f32 %v190, %v464
    %v473 = vadd.f32 %v192, %v466
    %v474 = vxor.u32 %v470, 2147483648
    %v475 = vmul.f32 %v474, 1.442695
    %v476 = vpow.pop %v475
    %v477 = vadd.f32 %v476, 1.0
    %v478 = vrcp.pop %v477
    %v479 = vmul.f32 1.0, %v478
    %v480 = vxor.u32 %v471, 2147483648
    %v481 = vmul.f32 %v480, 1.442695
    %v482 = vpow.pop %v481
    %v483 = vadd.f32 %v482, 1.0
    %v484 = vrcp.pop %v483
    %v485 = vmul.f32 1.0, %v484
    %v486 = vtanh.pop %v472
    %v487 = vxor.u32 %v473, 2147483648
    %v488 = vmul.f32 %v487, 1.442695
    %v489 = vpow.pop %v488
    %v490 = vadd.f32 %v489, 1.0
    %v491 = vrcp.pop %v490
    %v492 = vmul.f32 1.0, %v491
    %v493 = vmul.f32 %v485, 0.0
    %v494 = vmul.f32 %v479, %v486
    %v495 = vadd.f32 %v493, %v494
    %v496 = vtanh.pop %v495
    %v497 = vmul.f32 %v492, %v496
    %v498 = vpack.c.bf16 %v497, %v497
    %499 = vmatprep.subr.bf16.mxu0 %v325
    %500 = vmatpush1.bf16.msra.mxu0 %v324
    %501 = vmatprep.subr.bf16.mxu0 %v329
    %502 = vmatpush1.bf16.msra.mxu0 %v328
    %503 = vmatprep.subr.bf16.mxu0 %v333
    %504 = vmatpush1.bf16.msra.mxu0 %v332
    %505 = vmatprep.subr.bf16.mxu0 %v337
    %506 = vmatpush1.bf16.msra.mxu0 %v336
    %507 = vmatprep.subr.bf16.mxu0 %v341
    %508 = vmatpush1.bf16.msra.mxu0 %v340
    %509 = vmatprep.subr.bf16.mxu0 %v345
    %510 = vmatpush1.bf16.msra.mxu0 %v344
    %511 = vmatprep.subr.bf16.mxu0 %v349
    %512 = vmatpush1.bf16.msra.mxu0 %v348
    %513 = vmatprep.subr.bf16.mxu0 %v353
    %514 = vmatpush1.bf16.msra.mxu0 %v352
    %515 = vmatprep.subr.bf16.mxu0 0
    %516 = vmatpush1.bf16.msra.mxu0 0
    %517 = vmatprep.subr.bf16.mxu0 0
    %518 = vmatpush1.bf16.msra.mxu0 0
    %519 = vmatprep.subr.bf16.mxu0 0
    %520 = vmatpush1.bf16.msra.mxu0 0
    %521 = vmatprep.subr.bf16.mxu0 0
    %522 = vmatpush1.bf16.msra.mxu0 0
    %523 = vmatprep.subr.bf16.mxu0 0
    %524 = vmatpush1.bf16.msra.mxu0 0
    %525 = vmatprep.subr.bf16.mxu0 0
    %526 = vmatpush1.bf16.msra.mxu0 0
    %527 = vmatprep.subr.bf16.mxu0 0
    %528 = vmatpush1.bf16.msra.mxu0 0
    %529 = vmatprep.subr.bf16.mxu0 0
    %530 = vmatpush1.bf16.msra.mxu0 0
    %531 = vmatprep.mubr.bf16.mxu0 0
    %532 = vmatmul.mubr.bf16.gmra.mrb[0].mxu0 %v498
    %v533 = vpop.f32.mrb[0].mxu0
    %v534 = vadd.f32 0.0, %v533
    %v535 = vpop.f32.mrb[0].mxu0
    %v536 = vadd.f32 0.0, %v535
    %v537 = vpop.f32.mrb[0].mxu0
    %v538 = vpop.f32.mrb[0].mxu0
    %539 = vdwg.mxu0
    %540 = vmatprep.subr.bf16.mxu0 %v327
    %541 = vmatpush1.bf16.msra.mxu0 %v326
    %542 = vmatprep.subr.bf16.mxu0 %v331
    %543 = vmatpush1.bf16.msra.mxu0 %v330
    %544 = vmatprep.subr.bf16.mxu0 %v335
    %545 = vmatpush1.bf16.msra.mxu0 %v334
    %546 = vmatprep.subr.bf16.mxu0 %v339
    %547 = vmatpush1.bf16.msra.mxu0 %v338
    %548 = vmatprep.subr.bf16.mxu0 %v343
    %549 = vmatpush1.bf16.msra.mxu0 %v342
    %550 = vmatprep.subr.bf16.mxu0 %v347
    %551 = vmatpush1.bf16.msra.mxu0 %v346
    %552 = vmatprep.subr.bf16.mxu0 %v351
    %553 = vmatpush1.bf16.msra.mxu0 %v350
    %554 = vmatprep.subr.bf16.mxu0 %v355
    %555 = vmatpush1.bf16.msra.mxu0 %v354
    %556 = vmatprep.subr.bf16.mxu0 0
    %557 = vmatpush1.bf16.msra.mxu0 0
    %558 = vmatprep.subr.bf16.mxu0 0
    %559 = vmatpush1.bf16.msra.mxu0 0
    %560 = vmatprep.subr.bf16.mxu0 0
    %561 = vmatpush1.bf16.msra.mxu0 0
    %562 = vmatprep.subr.bf16.mxu0 0
    %563 = vmatpush1.bf16.msra.mxu0 0
    %564 = vmatprep.subr.bf16.mxu0 0
    %565 = vmatpush1.bf16.msra.mxu0 0
    %566 = vmatprep.subr.bf16.mxu0 0
    %567 = vmatpush1.bf16.msra.mxu0 0
    %568 = vmatprep.subr.bf16.mxu0 0
    %569 = vmatpush1.bf16.msra.mxu0 0
    %570 = vmatprep.subr.bf16.mxu0 0
    %571 = vmatpush1.bf16.msra.mxu0 0
    %572 = vmatprep.mubr.bf16.mxu0 0
    %573 = vmatmul.mubr.bf16.gmra.mrb[0].mxu0 %v498
    %v574 = vpop.f32.mrb[0].mxu0
    %v575 = vadd.f32 0.0, %v574
    %v576 = vpop.f32.mrb[0].mxu0
    %v577 = vadd.f32 0.0, %v576
    %v578 = vpop.f32.mrb[0].mxu0
    %v579 = vpop.f32.mrb[0].mxu0
    %580 = vdwg.mxu0
    %v585 = vrot.slane %v534, 7
    %v586 = vrot.slane %v536, 7
    %v587 = vrot.slane %v575, 7
    %v588 = vrot.slane %v577, 7
    %v593 = vadd.f32 %v149, %v585
    %v594 = vadd.f32 %v151, %v586
    %v595 = vadd.f32 %v190, %v587
    %v596 = vadd.f32 %v192, %v588
    %v597 = vxor.u32 %v593, 2147483648
    %v598 = vmul.f32 %v597, 1.442695
    %v599 = vpow.pop %v598
    %v600 = vadd.f32 %v599, 1.0
    %v601 = vrcp.pop %v600
    %v602 = vmul.f32 1.0, %v601
    %v603 = vxor.u32 %v594, 2147483648
    %v604 = vmul.f32 %v603, 1.442695
    %v605 = vpow.pop %v604
    %v606 = vadd.f32 %v605, 1.0
    %v607 = vrcp.pop %v606
    %v608 = vmul.f32 1.0, %v607
    %v609 = vtanh.pop %v595
    %v610 = vxor.u32 %v596, 2147483648
    %v611 = vmul.f32 %v610, 1.442695
    %v612 = vpow.pop %v611
    %v613 = vadd.f32 %v612, 1.0
    %v614 = vrcp.pop %v613
    %v615 = vmul.f32 1.0, %v614
    %v617 = vrot.slane %v495, 7
    %v619 = vmul.f32 %v608, %v617
    %v620 = vmul.f32 %v602, %v609
    %v621 = vadd.f32 %v619, %v620
    %v622 = vtanh.pop %v621
    %v623 = vmul.f32 %v615, %v622
    %v624 = vpack.c.bf16 %v623, %v623
    %v626 = vshrl.u32 %v624, 16
    %629 = vmatprep.subr.bf16.mxu0 %v325
    %630 = vmatpush1.bf16.msra.mxu0 %v324
    %631 = vmatprep.subr.bf16.mxu0 %v329
    %632 = vmatpush1.bf16.msra.mxu0 %v328
    %633 = vmatprep.subr.bf16.mxu0 %v333
    %634 = vmatpush1.bf16.msra.mxu0 %v332
    %635 = vmatprep.subr.bf16.mxu0 %v337
    %636 = vmatpush1.bf16.msra.mxu0 %v336
    %637 = vmatprep.subr.bf16.mxu0 %v341
    %638 = vmatpush1.bf16.msra.mxu0 %v340
    %639 = vmatprep.subr.bf16.mxu0 %v345
    %640 = vmatpush1.bf16.msra.mxu0 %v344
    %641 = vmatprep.subr.bf16.mxu0 %v349
    %642 = vmatpush1.bf16.msra.mxu0 %v348
    %643 = vmatprep.subr.bf16.mxu0 %v353
    %644 = vmatpush1.bf16.msra.mxu0 %v352
    %645 = vmatprep.subr.bf16.mxu0 0
    %646 = vmatpush1.bf16.msra.mxu0 0
    %647 = vmatprep.subr.bf16.mxu0 0
    %648 = vmatpush1.bf16.msra.mxu0 0
    %649 = vmatprep.subr.bf16.mxu0 0
    %650 = vmatpush1.bf16.msra.mxu0 0
    %651 = vmatprep.subr.bf16.mxu0 0
    %652 = vmatpush1.bf16.msra.mxu0 0
    %653 = vmatprep.subr.bf16.mxu0 0
    %654 = vmatpush1.bf16.msra.mxu0 0
    %655 = vmatprep.subr.bf16.mxu0 0
    %656 = vmatpush1.bf16.msra.mxu0 0
    %657 = vmatprep.subr.bf16.mxu0 0
    %658 = vmatpush1.bf16.msra.mxu0 0
    %659 = vmatprep.subr.bf16.mxu0 0
    %660 = vmatpush1.bf16.msra.mxu0 0
    %661 = vmatprep.mubr.bf16.mxu0 0
    %662 = vmatmul.mubr.bf16.gmra.mrb[0].mxu0 %v626
    %v663 = vpop.f32.mrb[0].mxu0
    %v664 = vadd.f32 0.0, %v663
    %v665 = vpop.f32.mrb[0].mxu0
    %v666 = vadd.f32 0.0, %v665
    %v667 = vpop.f32.mrb[0].mxu0
    %v668 = vpop.f32.mrb[0].mxu0
    %669 = vdwg.mxu0
    %670 = vmatprep.subr.bf16.mxu0 %v327
    %671 = vmatpush1.bf16.msra.mxu0 %v326
    %672 = vmatprep.subr.bf16.mxu0 %v331
    %673 = vmatpush1.bf16.msra.mxu0 %v330
    %674 = vmatprep.subr.bf16.mxu0 %v335
    %675 = vmatpush1.bf16.msra.mxu0 %v334
    %676 = vmatprep.subr.bf16.mxu0 %v339
    %677 = vmatpush1.bf16.msra.mxu0 %v338
    %678 = vmatprep.subr.bf16.mxu0 %v343
    %679 = vmatpush1.bf16.msra.mxu0 %v342
    %680 = vmatprep.subr.bf16.mxu0 %v347
    %681 = vmatpush1.bf16.msra.mxu0 %v346
    %682 = vmatprep.subr.bf16.mxu0 %v351
    %683 = vmatpush1.bf16.msra.mxu0 %v350
    %684 = vmatprep.subr.bf16.mxu0 %v355
    %685 = vmatpush1.bf16.msra.mxu0 %v354
    %686 = vmatprep.subr.bf16.mxu0 0
    %687 = vmatpush1.bf16.msra.mxu0 0
    %688 = vmatprep.subr.bf16.mxu0 0
    %689 = vmatpush1.bf16.msra.mxu0 0
    %690 = vmatprep.subr.bf16.mxu0 0
    %691 = vmatpush1.bf16.msra.mxu0 0
    %692 = vmatprep.subr.bf16.mxu0 0
    %693 = vmatpush1.bf16.msra.mxu0 0
    %694 = vmatprep.subr.bf16.mxu0 0
    %695 = vmatpush1.bf16.msra.mxu0 0
    %696 = vmatprep.subr.bf16.mxu0 0
    %697 = vmatpush1.bf16.msra.mxu0 0
    %698 = vmatprep.subr.bf16.mxu0 0
    %699 = vmatpush1.bf16.msra.mxu0 0
    %700 = vmatprep.subr.bf16.mxu0 0
    %701 = vmatpush1.bf16.msra.mxu0 0
    %702 = vmatprep.mubr.bf16.mxu0 0
    %703 = vmatmul.mubr.bf16.gmra.mrb[0].mxu0 %v626
    %v704 = vpop.f32.mrb[0].mxu0
    %v705 = vadd.f32 0.0, %v704
    %v706 = vpop.f32.mrb[0].mxu0
    %v707 = vadd.f32 0.0, %v706
    %v708 = vpop.f32.mrb[0].mxu0
    %v709 = vpop.f32.mrb[0].mxu0
    %710 = vdwg.mxu0
    %v715 = vrot.slane %v664, 6
    %v716 = vrot.slane %v666, 6
    %v717 = vrot.slane %v705, 6
    %v718 = vrot.slane %v707, 6
    %v723 = vadd.f32 %v149, %v715
    %v724 = vadd.f32 %v151, %v716
    %v725 = vadd.f32 %v190, %v717
    %v726 = vadd.f32 %v192, %v718
    %v727 = vxor.u32 %v723, 2147483648
    %v728 = vmul.f32 %v727, 1.442695
    %v729 = vpow.pop %v728
    %v730 = vadd.f32 %v729, 1.0
    %v731 = vrcp.pop %v730
    %v732 = vmul.f32 1.0, %v731
    %v733 = vxor.u32 %v724, 2147483648
    %v734 = vmul.f32 %v733, 1.442695
    %v735 = vpow.pop %v734
    %v736 = vadd.f32 %v735, 1.0
    %v737 = vrcp.pop %v736
    %v738 = vmul.f32 1.0, %v737
    %v739 = vtanh.pop %v725
    %v740 = vxor.u32 %v726, 2147483648
    %v741 = vmul.f32 %v740, 1.442695
    %v742 = vpow.pop %v741
    %v743 = vadd.f32 %v742, 1.0
    %v744 = vrcp.pop %v743
    %v745 = vmul.f32 1.0, %v744
    %v747 = vrot.slane %v621, 7
    %v749 = vmul.f32 %v738, %v747
    %v750 = vmul.f32 %v732, %v739
    %v751 = vadd.f32 %v749, %v750
    %v752 = vtanh.pop %v751
    %v753 = vmul.f32 %v745, %v752
    %v754 = vpack.c.bf16 %v753, %v753
    %v756 = vrot.slane %v754, 1
    %758 = vmatprep.subr.bf16.mxu0 %v325
    %759 = vmatpush1.bf16.msra.mxu0 %v324
    %760 = vmatprep.subr.bf16.mxu0 %v329
    %761 = vmatpush1.bf16.msra.mxu0 %v328
    %762 = vmatprep.subr.bf16.mxu0 %v333
    %763 = vmatpush1.bf16.msra.mxu0 %v332
    %764 = vmatprep.subr.bf16.mxu0 %v337
    %765 = vmatpush1.bf16.msra.mxu0 %v336
    %766 = vmatprep.subr.bf16.mxu0 %v341
    %767 = vmatpush1.bf16.msra.mxu0 %v340
    %768 = vmatprep.subr.bf16.mxu0 %v345
    %769 = vmatpush1.bf16.msra.mxu0 %v344
    %770 = vmatprep.subr.bf16.mxu0 %v349
    %771 = vmatpush1.bf16.msra.mxu0 %v348
    %772 = vmatprep.subr.bf16.mxu0 %v353
    %773 = vmatpush1.bf16.msra.mxu0 %v352
    %774 = vmatprep.subr.bf16.mxu0 0
    %775 = vmatpush1.bf16.msra.mxu0 0
    %776 = vmatprep.subr.bf16.mxu0 0
    %777 = vmatpush1.bf16.msra.mxu0 0
    %778 = vmatprep.subr.bf16.mxu0 0
    %779 = vmatpush1.bf16.msra.mxu0 0
    %780 = vmatprep.subr.bf16.mxu0 0
    %781 = vmatpush1.bf16.msra.mxu0 0
    %782 = vmatprep.subr.bf16.mxu0 0
    %783 = vmatpush1.bf16.msra.mxu0 0
    %784 = vmatprep.subr.bf16.mxu0 0
    %785 = vmatpush1.bf16.msra.mxu0 0
    %786 = vmatprep.subr.bf16.mxu0 0
    %787 = vmatpush1.bf16.msra.mxu0 0
    %788 = vmatprep.subr.bf16.mxu0 0
    %789 = vmatpush1.bf16.msra.mxu0 0
    %790 = vmatprep.mubr.bf16.mxu0 0
    %791 = vmatmul.mubr.bf16.gmra.mrb[0].mxu0 %v756
    %v792 = vpop.f32.mrb[0].mxu0
    %v793 = vadd.f32 0.0, %v792
    %v794 = vpop.f32.mrb[0].mxu0
    %v795 = vadd.f32 0.0, %v794
    %v796 = vpop.f32.mrb[0].mxu0
    %v797 = vpop.f32.mrb[0].mxu0
    %798 = vdwg.mxu0
    %799 = vmatprep.subr.bf16.mxu0 %v327
    %800 = vmatpush1.bf16.msra.mxu0 %v326
    %801 = vmatprep.subr.bf16.mxu0 %v331
    %802 = vmatpush1.bf16.msra.mxu0 %v330
    %803 = vmatprep.subr.bf16.mxu0 %v335
    %804 = vmatpush1.bf16.msra.mxu0 %v334
    %805 = vmatprep.subr.bf16.mxu0 %v339
    %806 = vmatpush1.bf16.msra.mxu0 %v338
    %807 = vmatprep.subr.bf16.mxu0 %v343
    %808 = vmatpush1.bf16.msra.mxu0 %v342
    %809 = vmatprep.subr.bf16.mxu0 %v347
    %810 = vmatpush1.bf16.msra.mxu0 %v346
    %811 = vmatprep.subr.bf16.mxu0 %v351
    %812 = vmatpush1.bf16.msra.mxu0 %v350
    %813 = vmatprep.subr.bf16.mxu0 %v355
    %814 = vmatpush1.bf16.msra.mxu0 %v354
    %815 = vmatprep.subr.bf16.mxu0 0
    %816 = vmatpush1.bf16.msra.mxu0 0
    %817 = vmatprep.subr.bf16.mxu0 0
    %818 = vmatpush1.bf16.msra.mxu0 0
    %819 = vmatprep.subr.bf16.mxu0 0
    %820 = vmatpush1.bf16.msra.mxu0 0
    %821 = vmatprep.subr.bf16.mxu0 0
    %822 = vmatpush1.bf16.msra.mxu0 0
    %823 = vmatprep.subr.bf16.mxu0 0
    %824 = vmatpush1.bf16.msra.mxu0 0
    %825 = vmatprep.subr.bf16.mxu0 0
    %826 = vmatpush1.bf16.msra.mxu0 0
    %827 = vmatprep.subr.bf16.mxu0 0
    %828 = vmatpush1.bf16.msra.mxu0 0
    %829 = vmatprep.subr.bf16.mxu0 0
    %830 = vmatpush1.bf16.msra.mxu0 0
    %831 = vmatprep.mubr.bf16.mxu0 0
    %832 = vmatmul.mubr.bf16.gmra.mrb[0].mxu0 %v756
    %v833 = vpop.f32.mrb[0].mxu0
    %v834 = vadd.f32 0.0, %v833
    %v835 = vpop.f32.mrb[0].mxu0
    %v836 = vadd.f32 0.0, %v835
    %v837 = vpop.f32.mrb[0].mxu0
    %v838 = vpop.f32.mrb[0].mxu0
    %839 = vdwg.mxu0
    %v844 = vrot.slane %v793, 5
    %v845 = vrot.slane %v795, 5
    %v846 = vrot.slane %v834, 5
    %v847 = vrot.slane %v836, 5
    %v852 = vadd.f32 %v149, %v844
    %v853 = vadd.f32 %v151, %v845
    %v854 = vadd.f32 %v190, %v846
    %v855 = vadd.f32 %v192, %v847
    %v856 = vxor.u32 %v852, 2147483648
    %v857 = vmul.f32 %v856, 1.442695
    %v858 = vpow.pop %v857
    %v859 = vadd.f32 %v858, 1.0
    %v860 = vrcp.pop %v859
    %v861 = vmul.f32 1.0, %v860
    %v862 = vxor.u32 %v853, 2147483648
    %v863 = vmul.f32 %v862, 1.442695
    %v864 = vpow.pop %v863
    %v865 = vadd.f32 %v864, 1.0
    %v866 = vrcp.pop %v865
    %v867 = vmul.f32 1.0, %v866
    %v868 = vtanh.pop %v854
    %v869 = vxor.u32 %v855, 2147483648
    %v870 = vmul.f32 %v869, 1.442695
    %v871 = vpow.pop %v870
    %v872 = vadd.f32 %v871, 1.0
    %v873 = vrcp.pop %v872
    %v874 = vmul.f32 1.0, %v873
    %v876 = vrot.slane %v751, 7
    %v878 = vmul.f32 %v867, %v876
    %v879 = vmul.f32 %v861, %v868
    %v880 = vadd.f32 %v878, %v879
    %v881 = vtanh.pop %v880
    %v882 = vmul.f32 %v874, %v881
    %v883 = vpack.c.bf16 %v882, %v882
    %v885 = vshrl.u32 %v883, 16
    %v887 = vrot.slane %v885, 1
    %889 = vmatprep.subr.bf16.mxu0 %v325
    %890 = vmatpush1.bf16.msra.mxu0 %v324
    %891 = vmatprep.subr.bf16.mxu0 %v329
    %892 = vmatpush1.bf16.msra.mxu0 %v328
    %893 = vmatprep.subr.bf16.mxu0 %v333
    %894 = vmatpush1.bf16.msra.mxu0 %v332
    %895 = vmatprep.subr.bf16.mxu0 %v337
    %896 = vmatpush1.bf16.msra.mxu0 %v336
    %897 = vmatprep.subr.bf16.mxu0 %v341
    %898 = vmatpush1.bf16.msra.mxu0 %v340
    %899 = vmatprep.subr.bf16.mxu0 %v345
    %900 = vmatpush1.bf16.msra.mxu0 %v344
    %901 = vmatprep.subr.bf16.mxu0 %v349
    %902 = vmatpush1.bf16.msra.mxu0 %v348
    %903 = vmatprep.subr.bf16.mxu0 %v353
    %904 = vmatpush1.bf16.msra.mxu0 %v352
    %905 = vmatprep.subr.bf16.mxu0 0
    %906 = vmatpush1.bf16.msra.mxu0 0
    %907 = vmatprep.subr.bf16.mxu0 0
    %908 = vmatpush1.bf16.msra.mxu0 0
    %909 = vmatprep.subr.bf16.mxu0 0
    %910 = vmatpush1.bf16.msra.mxu0 0
    %911 = vmatprep.subr.bf16.mxu0 0
    %912 = vmatpush1.bf16.msra.mxu0 0
    %913 = vmatprep.subr.bf16.mxu0 0
    %914 = vmatpush1.bf16.msra.mxu0 0
    %915 = vmatprep.subr.bf16.mxu0 0
    %916 = vmatpush1.bf16.msra.mxu0 0
    %917 = vmatprep.subr.bf16.mxu0 0
    %918 = vmatpush1.bf16.msra.mxu0 0
    %919 = vmatprep.subr.bf16.mxu0 0
    %920 = vmatpush1.bf16.msra.mxu0 0
    %921 = vmatprep.mubr.bf16.mxu0 0
    %922 = vmatmul.mubr.bf16.gmra.mrb[0].mxu0 %v887
    %v923 = vpop.f32.mrb[0].mxu0
    %v924 = vadd.f32 0.0, %v923
    %v925 = vpop.f32.mrb[0].mxu0
    %v926 = vadd.f32 0.0, %v925
    %v927 = vpop.f32.mrb[0].mxu0
    %v928 = vpop.f32.mrb[0].mxu0
    %929 = vdwg.mxu0
    %930 = vmatprep.subr.bf16.mxu0 %v327
    %931 = vmatpush1.bf16.msra.mxu0 %v326
    %932 = vmatprep.subr.bf16.mxu0 %v331
    %933 = vmatpush1.bf16.msra.mxu0 %v330
    %934 = vmatprep.subr.bf16.mxu0 %v335
    %935 = vmatpush1.bf16.msra.mxu0 %v334
    %936 = vmatprep.subr.bf16.mxu0 %v339
    %937 = vmatpush1.bf16.msra.mxu0 %v338
    %938 = vmatprep.subr.bf16.mxu0 %v343
    %939 = vmatpush1.bf16.msra.mxu0 %v342
    %940 = vmatprep.subr.bf16.mxu0 %v347
    %941 = vmatpush1.bf16.msra.mxu0 %v346
    %942 = vmatprep.subr.bf16.mxu0 %v351
    %943 = vmatpush1.bf16.msra.mxu0 %v350
    %944 = vmatprep.subr.bf16.mxu0 %v355
    %945 = vmatpush1.bf16.msra.mxu0 %v354
    %946 = vmatprep.subr.bf16.mxu0 0
    %947 = vmatpush1.bf16.msra.mxu0 0
    %948 = vmatprep.subr.bf16.mxu0 0
    %949 = vmatpush1.bf16.msra.mxu0 0
    %950 = vmatprep.subr.bf16.mxu0 0
    %951 = vmatpush1.bf16.msra.mxu0 0
    %952 = vmatprep.subr.bf16.mxu0 0
    %953 = vmatpush1.bf16.msra.mxu0 0
    %954 = vmatprep.subr.bf16.mxu0 0
    %955 = vmatpush1.bf16.msra.mxu0 0
    %956 = vmatprep.subr.bf16.mxu0 0
    %957 = vmatpush1.bf16.msra.mxu0 0
    %958 = vmatprep.subr.bf16.mxu0 0
    %959 = vmatpush1.bf16.msra.mxu0 0
    %960 = vmatprep.subr.bf16.mxu0 0
    %961 = vmatpush1.bf16.msra.mxu0 0
    %962 = vmatprep.mubr.bf16.mxu0 0
    %963 = vmatmul.mubr.bf16.gmra.mrb[0].mxu0 %v887
    %v964 = vpop.f32.mrb[0].mxu0
    %v965 = vadd.f32 0.0, %v964
    %v966 = vpop.f32.mrb[0].mxu0
    %v967 = vadd.f32 0.0, %v966
    %v968 = vpop.f32.mrb[0].mxu0
    %v969 = vpop.f32.mrb[0].mxu0
    %970 = vdwg.mxu0
    %v975 = vrot.slane %v924, 4
    %v976 = vrot.slane %v926, 4
    %v977 = vrot.slane %v965, 4
    %v978 = vrot.slane %v967, 4
    %v983 = vadd.f32 %v149, %v975
    %v984 = vadd.f32 %v151, %v976
    %v985 = vadd.f32 %v190, %v977
    %v986 = vadd.f32 %v192, %v978
    %v987 = vxor.u32 %v983, 2147483648
    %v988 = vmul.f32 %v987, 1.442695
    %v989 = vpow.pop %v988
    %v990 = vadd.f32 %v989, 1.0
    %v991 = vrcp.pop %v990
    %v992 = vmul.f32 1.0, %v991
    %v993 = vxor.u32 %v984, 2147483648
    %v994 = vmul.f32 %v993, 1.442695
    %v995 = vpow.pop %v994
    %v996 = vadd.f32 %v995, 1.0
    %v997 = vrcp.pop %v996
    %v998 = vmul.f32 1.0, %v997
    %v999 = vtanh.pop %v985
    %v1000 = vxor.u32 %v986, 2147483648
    %v1001 = vmul.f32 %v1000, 1.442695
    %v1002 = vpow.pop %v1001
    %v1003 = vadd.f32 %v1002, 1.0
    %v1004 = vrcp.pop %v1003
    %v1005 = vmul.f32 1.0, %v1004
    %v1007 = vrot.slane %v880, 7
    %v1009 = vmul.f32 %v998, %v1007
    %v1010 = vmul.f32 %v992, %v999
    %v1011 = vadd.f32 %v1009, %v1010
    %v1012 = vtanh.pop %v1011
    %v1013 = vmul.f32 %v1005, %v1012
    %v1014 = vpack.c.bf16 %v1013, %v1013
    %v1016 = vrot.slane %v1014, 2
    %1018 = vmatprep.subr.bf16.mxu0 %v325
    %1019 = vmatpush1.bf16.msra.mxu0 %v324
    %1020 = vmatprep.subr.bf16.mxu0 %v329
    %1021 = vmatpush1.bf16.msra.mxu0 %v328
    %1022 = vmatprep.subr.bf16.mxu0 %v333
    %1023 = vmatpush1.bf16.msra.mxu0 %v332
    %1024 = vmatprep.subr.bf16.mxu0 %v337
    %1025 = vmatpush1.bf16.msra.mxu0 %v336
    %1026 = vmatprep.subr.bf16.mxu0 %v341
    %1027 = vmatpush1.bf16.msra.mxu0 %v340
    %1028 = vmatprep.subr.bf16.mxu0 %v345
    %1029 = vmatpush1.bf16.msra.mxu0 %v344
    %1030 = vmatprep.subr.bf16.mxu0 %v349
    %1031 = vmatpush1.bf16.msra.mxu0 %v348
    %1032 = vmatprep.subr.bf16.mxu0 %v353
    %1033 = vmatpush1.bf16.msra.mxu0 %v352
    %1034 = vmatprep.subr.bf16.mxu0 0
    %1035 = vmatpush1.bf16.msra.mxu0 0
    %1036 = vmatprep.subr.bf16.mxu0 0
    %1037 = vmatpush1.bf16.msra.mxu0 0
    %1038 = vmatprep.subr.bf16.mxu0 0
    %1039 = vmatpush1.bf16.msra.mxu0 0
    %1040 = vmatprep.subr.bf16.mxu0 0
    %1041 = vmatpush1.bf16.msra.mxu0 0
    %1042 = vmatprep.subr.bf16.mxu0 0
    %1043 = vmatpush1.bf16.msra.mxu0 0
    %1044 = vmatprep.subr.bf16.mxu0 0
    %1045 = vmatpush1.bf16.msra.mxu0 0
    %1046 = vmatprep.subr.bf16.mxu0 0
    %1047 = vmatpush1.bf16.msra.mxu0 0
    %1048 = vmatprep.subr.bf16.mxu0 0
    %1049 = vmatpush1.bf16.msra.mxu0 0
    %1050 = vmatprep.mubr.bf16.mxu0 0
    %1051 = vmatmul.mubr.bf16.gmra.mrb[0].mxu0 %v1016
    %v1052 = vpop.f32.mrb[0].mxu0
    %v1053 = vadd.f32 0.0, %v1052
    %v1054 = vpop.f32.mrb[0].mxu0
    %v1055 = vadd.f32 0.0, %v1054
    %v1056 = vpop.f32.mrb[0].mxu0
    %v1057 = vpop.f32.mrb[0].mxu0
    %1058 = vdwg.mxu0
    %1059 = vmatprep.subr.bf16.mxu0 %v327
    %1060 = vmatpush1.bf16.msra.mxu0 %v326
    %1061 = vmatprep.subr.bf16.mxu0 %v331
    %1062 = vmatpush1.bf16.msra.mxu0 %v330
    %1063 = vmatprep.subr.bf16.mxu0 %v335
    %1064 = vmatpush1.bf16.msra.mxu0 %v334
    %1065 = vmatprep.subr.bf16.mxu0 %v339
    %1066 = vmatpush1.bf16.msra.mxu0 %v338
    %1067 = vmatprep.subr.bf16.mxu0 %v343
    %1068 = vmatpush1.bf16.msra.mxu0 %v342
    %1069 = vmatprep.subr.bf16.mxu0 %v347
    %1070 = vmatpush1.bf16.msra.mxu0 %v346
    %1071 = vmatprep.subr.bf16.mxu0 %v351
    %1072 = vmatpush1.bf16.msra.mxu0 %v350
    %1073 = vmatprep.subr.bf16.mxu0 %v355
    %1074 = vmatpush1.bf16.msra.mxu0 %v354
    %1075 = vmatprep.subr.bf16.mxu0 0
    %1076 = vmatpush1.bf16.msra.mxu0 0
    %1077 = vmatprep.subr.bf16.mxu0 0
    %1078 = vmatpush1.bf16.msra.mxu0 0
    %1079 = vmatprep.subr.bf16.mxu0 0
    %1080 = vmatpush1.bf16.msra.mxu0 0
    %1081 = vmatprep.subr.bf16.mxu0 0
    %1082 = vmatpush1.bf16.msra.mxu0 0
    %1083 = vmatprep.subr.bf16.mxu0 0
    %1084 = vmatpush1.bf16.msra.mxu0 0
    %1085 = vmatprep.subr.bf16.mxu0 0
    %1086 = vmatpush1.bf16.msra.mxu0 0
    %1087 = vmatprep.subr.bf16.mxu0 0
    %1088 = vmatpush1.bf16.msra.mxu0 0
    %1089 = vmatprep.subr.bf16.mxu0 0
    %1090 = vmatpush1.bf16.msra.mxu0 0
    %1091 = vmatprep.mubr.bf16.mxu0 0
    %1092 = vmatmul.mubr.bf16.gmra.mrb[0].mxu0 %v1016
    %v1093 = vpop.f32.mrb[0].mxu0
    %v1094 = vadd.f32 0.0, %v1093
    %v1095 = vpop.f32.mrb[0].mxu0
    %v1096 = vadd.f32 0.0, %v1095
    %v1097 = vpop.f32.mrb[0].mxu0
    %v1098 = vpop.f32.mrb[0].mxu0
    %1099 = vdwg.mxu0
    %v1104 = vrot.slane %v1053, 3
    %v1105 = vrot.slane %v1055, 3
    %v1106 = vrot.slane %v1094, 3
    %v1107 = vrot.slane %v1096, 3
    %v1112 = vadd.f32 %v149, %v1104
    %v1113 = vadd.f32 %v151, %v1105
    %v1114 = vadd.f32 %v190, %v1106
    %v1115 = vadd.f32 %v192, %v1107
    %v1116 = vxor.u32 %v1112, 2147483648
    %v1117 = vmul.f32 %v1116, 1.442695
    %v1118 = vpow.pop %v1117
    %v1119 = vadd.f32 %v1118, 1.0
    %v1120 = vrcp.pop %v1119
    %v1121 = vmul.f32 1.0, %v1120
    %v1122 = vxor.u32 %v1113, 2147483648
    %v1123 = vmul.f32 %v1122, 1.442695
    %v1124 = vpow.pop %v1123
    %v1125 = vadd.f32 %v1124, 1.0
    %v1126 = vrcp.pop %v1125
    %v1127 = vmul.f32 1.0, %v1126
    %v1128 = vtanh.pop %v1114
    %v1129 = vxor.u32 %v1115, 2147483648
    %v1130 = vmul.f32 %v1129, 1.442695
    %v1131 = vpow.pop %v1130
    %v1132 = vadd.f32 %v1131, 1.0
    %v1133 = vrcp.pop %v1132
    %v1134 = vmul.f32 1.0, %v1133
    %v1136 = vrot.slane %v1011, 7
    %v1138 = vmul.f32 %v1127, %v1136
    %v1139 = vmul.f32 %v1121, %v1128
    %v1140 = vadd.f32 %v1138, %v1139
    %v1141 = vtanh.pop %v1140
    %v1142 = vmul.f32 %v1134, %v1141
    %v1143 = vpack.c.bf16 %v1142, %v1142
    %v1145 = vshrl.u32 %v1143, 16
    %v1147 = vrot.slane %v1145, 2
    %1149 = vmatprep.subr.bf16.mxu0 %v325
    %1150 = vmatpush1.bf16.msra.mxu0 %v324
    %1151 = vmatprep.subr.bf16.mxu0 %v329
    %1152 = vmatpush1.bf16.msra.mxu0 %v328
    %1153 = vmatprep.subr.bf16.mxu0 %v333
    %1154 = vmatpush1.bf16.msra.mxu0 %v332
    %1155 = vmatprep.subr.bf16.mxu0 %v337
    %1156 = vmatpush1.bf16.msra.mxu0 %v336
    %1157 = vmatprep.subr.bf16.mxu0 %v341
    %1158 = vmatpush1.bf16.msra.mxu0 %v340
    %1159 = vmatprep.subr.bf16.mxu0 %v345
    %1160 = vmatpush1.bf16.msra.mxu0 %v344
    %1161 = vmatprep.subr.bf16.mxu0 %v349
    %1162 = vmatpush1.bf16.msra.mxu0 %v348
    %1163 = vmatprep.subr.bf16.mxu0 %v353
    %1164 = vmatpush1.bf16.msra.mxu0 %v352
    %1165 = vmatprep.subr.bf16.mxu0 0
    %1166 = vmatpush1.bf16.msra.mxu0 0
    %1167 = vmatprep.subr.bf16.mxu0 0
    %1168 = vmatpush1.bf16.msra.mxu0 0
    %1169 = vmatprep.subr.bf16.mxu0 0
    %1170 = vmatpush1.bf16.msra.mxu0 0
    %1171 = vmatprep.subr.bf16.mxu0 0
    %1172 = vmatpush1.bf16.msra.mxu0 0
    %1173 = vmatprep.subr.bf16.mxu0 0
    %1174 = vmatpush1.bf16.msra.mxu0 0
    %1175 = vmatprep.subr.bf16.mxu0 0
    %1176 = vmatpush1.bf16.msra.mxu0 0
    %1177 = vmatprep.subr.bf16.mxu0 0
    %1178 = vmatpush1.bf16.msra.mxu0 0
    %1179 = vmatprep.subr.bf16.mxu0 0
    %1180 = vmatpush1.bf16.msra.mxu0 0
    %1181 = vmatprep.mubr.bf16.mxu0 0
    %1182 = vmatmul.mubr.bf16.gmra.mrb[0].mxu0 %v1147
    %v1183 = vpop.f32.mrb[0].mxu0
    %v1184 = vadd.f32 0.0, %v1183
    %v1185 = vpop.f32.mrb[0].mxu0
    %v1186 = vadd.f32 0.0, %v1185
    %v1187 = vpop.f32.mrb[0].mxu0
    %v1188 = vpop.f32.mrb[0].mxu0
    %1189 = vdwg.mxu0
    %1190 = vmatprep.subr.bf16.mxu0 %v327
    %1191 = vmatpush1.bf16.msra.mxu0 %v326
    %1192 = vmatprep.subr.bf16.mxu0 %v331
    %1193 = vmatpush1.bf16.msra.mxu0 %v330
    %1194 = vmatprep.subr.bf16.mxu0 %v335
    %1195 = vmatpush1.bf16.msra.mxu0 %v334
    %1196 = vmatprep.subr.bf16.mxu0 %v339
    %1197 = vmatpush1.bf16.msra.mxu0 %v338
    %1198 = vmatprep.subr.bf16.mxu0 %v343
    %1199 = vmatpush1.bf16.msra.mxu0 %v342
    %1200 = vmatprep.subr.bf16.mxu0 %v347
    %1201 = vmatpush1.bf16.msra.mxu0 %v346
    %1202 = vmatprep.subr.bf16.mxu0 %v351
    %1203 = vmatpush1.bf16.msra.mxu0 %v350
    %1204 = vmatprep.subr.bf16.mxu0 %v355
    %1205 = vmatpush1.bf16.msra.mxu0 %v354
    %1206 = vmatprep.subr.bf16.mxu0 0
    %1207 = vmatpush1.bf16.msra.mxu0 0
    %1208 = vmatprep.subr.bf16.mxu0 0
    %1209 = vmatpush1.bf16.msra.mxu0 0
    %1210 = vmatprep.subr.bf16.mxu0 0
    %1211 = vmatpush1.bf16.msra.mxu0 0
    %1212 = vmatprep.subr.bf16.mxu0 0
    %1213 = vmatpush1.bf16.msra.mxu0 0
    %1214 = vmatprep.subr.bf16.mxu0 0
    %1215 = vmatpush1.bf16.msra.mxu0 0
    %1216 = vmatprep.subr.bf16.mxu0 0
    %1217 = vmatpush1.bf16.msra.mxu0 0
    %1218 = vmatprep.subr.bf16.mxu0 0
    %1219 = vmatpush1.bf16.msra.mxu0 0
    %1220 = vmatprep.subr.bf16.mxu0 0
    %1221 = vmatpush1.bf16.msra.mxu0 0
    %1222 = vmatprep.mubr.bf16.mxu0 0
    %1223 = vmatmul.mubr.bf16.gmra.mrb[0].mxu0 %v1147
    %v1224 = vpop.f32.mrb[0].mxu0
    %v1225 = vadd.f32 0.0, %v1224
    %v1226 = vpop.f32.mrb[0].mxu0
    %v1227 = vadd.f32 0.0, %v1226
    %v1228 = vpop.f32.mrb[0].mxu0
    %v1229 = vpop.f32.mrb[0].mxu0
    %1230 = vdwg.mxu0
    %v1235 = vrot.slane %v1184, 2
    %v1236 = vrot.slane %v1186, 2
    %v1237 = vrot.slane %v1225, 2
    %v1238 = vrot.slane %v1227, 2
    %v1243 = vadd.f32 %v149, %v1235
    %v1244 = vadd.f32 %v151, %v1236
    %v1245 = vadd.f32 %v190, %v1237
    %v1246 = vadd.f32 %v192, %v1238
    %v1247 = vxor.u32 %v1243, 2147483648
    %v1248 = vmul.f32 %v1247, 1.442695
    %v1249 = vpow.pop %v1248
    %v1250 = vadd.f32 %v1249, 1.0
    %v1251 = vrcp.pop %v1250
    %v1252 = vmul.f32 1.0, %v1251
    %v1253 = vxor.u32 %v1244, 2147483648
    %v1254 = vmul.f32 %v1253, 1.442695
    %v1255 = vpow.pop %v1254
    %v1256 = vadd.f32 %v1255, 1.0
    %v1257 = vrcp.pop %v1256
    %v1258 = vmul.f32 1.0, %v1257
    %v1259 = vtanh.pop %v1245
    %v1260 = vxor.u32 %v1246, 2147483648
    %v1261 = vmul.f32 %v1260, 1.442695
    %v1262 = vpow.pop %v1261
    %v1263 = vadd.f32 %v1262, 1.0
    %v1264 = vrcp.pop %v1263
    %v1265 = vmul.f32 1.0, %v1264
    %v1267 = vrot.slane %v1140, 7
    %v1269 = vmul.f32 %v1258, %v1267
    %v1270 = vmul.f32 %v1252, %v1259
    %v1271 = vadd.f32 %v1269, %v1270
    %v1272 = vtanh.pop %v1271
    %v1273 = vmul.f32 %v1265, %v1272
    %v1274 = vpack.c.bf16 %v1273, %v1273
    %v1276 = vrot.slane %v1274, 3
    %1278 = vmatprep.subr.bf16.mxu0 %v325
    %1279 = vmatpush1.bf16.msra.mxu0 %v324
    %1280 = vmatprep.subr.bf16.mxu0 %v329
    %1281 = vmatpush1.bf16.msra.mxu0 %v328
    %1282 = vmatprep.subr.bf16.mxu0 %v333
    %1283 = vmatpush1.bf16.msra.mxu0 %v332
    %1284 = vmatprep.subr.bf16.mxu0 %v337
    %1285 = vmatpush1.bf16.msra.mxu0 %v336
    %1286 = vmatprep.subr.bf16.mxu0 %v341
    %1287 = vmatpush1.bf16.msra.mxu0 %v340
    %1288 = vmatprep.subr.bf16.mxu0 %v345
    %1289 = vmatpush1.bf16.msra.mxu0 %v344
    %1290 = vmatprep.subr.bf16.mxu0 %v349
    %1291 = vmatpush1.bf16.msra.mxu0 %v348
    %1292 = vmatprep.subr.bf16.mxu0 %v353
    %1293 = vmatpush1.bf16.msra.mxu0 %v352
    %1294 = vmatprep.subr.bf16.mxu0 0
    %1295 = vmatpush1.bf16.msra.mxu0 0
    %1296 = vmatprep.subr.bf16.mxu0 0
    %1297 = vmatpush1.bf16.msra.mxu0 0
    %1298 = vmatprep.subr.bf16.mxu0 0
    %1299 = vmatpush1.bf16.msra.mxu0 0
    %1300 = vmatprep.subr.bf16.mxu0 0
    %1301 = vmatpush1.bf16.msra.mxu0 0
    %1302 = vmatprep.subr.bf16.mxu0 0
    %1303 = vmatpush1.bf16.msra.mxu0 0
    %1304 = vmatprep.subr.bf16.mxu0 0
    %1305 = vmatpush1.bf16.msra.mxu0 0
    %1306 = vmatprep.subr.bf16.mxu0 0
    %1307 = vmatpush1.bf16.msra.mxu0 0
    %1308 = vmatprep.subr.bf16.mxu0 0
    %1309 = vmatpush1.bf16.msra.mxu0 0
    %1310 = vmatprep.mubr.bf16.mxu0 0
    %1311 = vmatmul.mubr.bf16.gmra.mrb[0].mxu0 %v1276
    %v1312 = vpop.f32.mrb[0].mxu0
    %v1313 = vadd.f32 0.0, %v1312
    %v1314 = vpop.f32.mrb[0].mxu0
    %v1315 = vadd.f32 0.0, %v1314
    %v1316 = vpop.f32.mrb[0].mxu0
    %v1317 = vpop.f32.mrb[0].mxu0
    %1318 = vdwg.mxu0
    %1319 = vmatprep.subr.bf16.mxu0 %v327
    %1320 = vmatpush1.bf16.msra.mxu0 %v326
    %1321 = vmatprep.subr.bf16.mxu0 %v331
    %1322 = vmatpush1.bf16.msra.mxu0 %v330
    %1323 = vmatprep.subr.bf16.mxu0 %v335
    %1324 = vmatpush1.bf16.msra.mxu0 %v334
    %1325 = vmatprep.subr.bf16.mxu0 %v339
    %1326 = vmatpush1.bf16.msra.mxu0 %v338
    %1327 = vmatprep.subr.bf16.mxu0 %v343
    %1328 = vmatpush1.bf16.msra.mxu0 %v342
    %1329 = vmatprep.subr.bf16.mxu0 %v347
    %1330 = vmatpush1.bf16.msra.mxu0 %v346
    %1331 = vmatprep.subr.bf16.mxu0 %v351
    %1332 = vmatpush1.bf16.msra.mxu0 %v350
    %1333 = vmatprep.subr.bf16.mxu0 %v355
    %1334 = vmatpush1.bf16.msra.mxu0 %v354
    %1335 = vmatprep.subr.bf16.mxu0 0
    %1336 = vmatpush1.bf16.msra.mxu0 0
    %1337 = vmatprep.subr.bf16.mxu0 0
    %1338 = vmatpush1.bf16.msra.mxu0 0
    %1339 = vmatprep.subr.bf16.mxu0 0
    %1340 = vmatpush1.bf16.msra.mxu0 0
    %1341 = vmatprep.subr.bf16.mxu0 0
    %1342 = vmatpush1.bf16.msra.mxu0 0
    %1343 = vmatprep.subr.bf16.mxu0 0
    %1344 = vmatpush1.bf16.msra.mxu0 0
    %1345 = vmatprep.subr.bf16.mxu0 0
    %1346 = vmatpush1.bf16.msra.mxu0 0
    %1347 = vmatprep.subr.bf16.mxu0 0
    %1348 = vmatpush1.bf16.msra.mxu0 0
    %1349 = vmatprep.subr.bf16.mxu0 0
    %1350 = vmatpush1.bf16.msra.mxu0 0
    %1351 = vmatprep.mubr.bf16.mxu0 0
    %1352 = vmatmul.mubr.bf16.gmra.mrb[0].mxu0 %v1276
    %v1353 = vpop.f32.mrb[0].mxu0
    %v1354 = vadd.f32 0.0, %v1353
    %v1355 = vpop.f32.mrb[0].mxu0
    %v1356 = vadd.f32 0.0, %v1355
    %v1357 = vpop.f32.mrb[0].mxu0
    %v1358 = vpop.f32.mrb[0].mxu0
    %1359 = vdwg.mxu0
    %v1364 = vrot.slane %v1313, 1
    %v1365 = vrot.slane %v1315, 1
    %v1366 = vrot.slane %v1354, 1
    %v1367 = vrot.slane %v1356, 1
    %v1372 = vadd.f32 %v149, %v1364
    %v1373 = vadd.f32 %v151, %v1365
    %v1374 = vadd.f32 %v190, %v1366
    %v1375 = vadd.f32 %v192, %v1367
    %v1376 = vxor.u32 %v1372, 2147483648
    %v1377 = vmul.f32 %v1376, 1.442695
    %v1378 = vpow.pop %v1377
    %v1379 = vadd.f32 %v1378, 1.0
    %v1380 = vrcp.pop %v1379
    %v1381 = vmul.f32 1.0, %v1380
    %v1382 = vxor.u32 %v1373, 2147483648
    %v1383 = vmul.f32 %v1382, 1.442695
    %v1384 = vpow.pop %v1383
    %v1385 = vadd.f32 %v1384, 1.0
    %v1386 = vrcp.pop %v1385
    %v1387 = vmul.f32 1.0, %v1386
    %v1388 = vtanh.pop %v1374
    %v1389 = vxor.u32 %v1375, 2147483648
    %v1390 = vmul.f32 %v1389, 1.442695
    %v1391 = vpow.pop %v1390
    %v1392 = vadd.f32 %v1391, 1.0
    %v1393 = vrcp.pop %v1392
    %v1394 = vmul.f32 1.0, %v1393
    %v1396 = vrot.slane %v1271, 7
    %v1398 = vmul.f32 %v1387, %v1396
    %v1399 = vmul.f32 %v1381, %v1388
    %v1400 = vadd.f32 %v1398, %v1399
    %v1401 = vtanh.pop %v1400
    %v1402 = vmul.f32 %v1394, %v1401
    %v1403 = vpack.c.bf16 %v1402, %v1402
    %v1404 = vld [vmem:[#allocation5] sm:$0xf]
    %v1405 = vld [vmem:[#allocation5 + $0x4] sm:$0xf]
    %v1406 = vld [vmem:[#allocation5 + $0x8] sm:$0xf]
    %v1407 = vld [vmem:[#allocation5 + $0xc] sm:$0xf]
    %v1408 = vld [vmem:[#allocation5 + $0x10] sm:$0xf]
    %v1409 = vld [vmem:[#allocation5 + $0x14] sm:$0xf]
    %v1410 = vld [vmem:[#allocation5 + $0x18] sm:$0xf]
    %v1411 = vld [vmem:[#allocation5 + $0x1c] sm:$0xf]
    %v1412 = vld [vmem:[#allocation5 + $0x20] sm:$0xf]
    %v1413 = vld [vmem:[#allocation5 + $0x24] sm:$0xf]
    %v1414 = vld [vmem:[#allocation5 + $0x28] sm:$0xf]
    %v1415 = vld [vmem:[#allocation5 + $0x2c] sm:$0xf]
    %v1416 = vld [vmem:[#allocation5 + $0x30] sm:$0xf]
    %v1417 = vld [vmem:[#allocation5 + $0x34] sm:$0xf]
    %v1418 = vld [vmem:[#allocation5 + $0x38] sm:$0xf]
    %v1419 = vld [vmem:[#allocation5 + $0x3c] sm:$0xf]
    %v1420 = vld [vmem:[%s4] sm:$0x1]
    %v1422 = vshrl.u32 %v1403, 16
    %v1424 = vrot.slane %v1422, 3
    %v1442 = vunpack.c.l.b16 %v1404
    %v1443 = vunpack.c.l.b16 %v1405
    %v1444 = vunpack.c.l.b16 %v1406
    %v1445 = vunpack.c.l.b16 %v1407
    %v1446 = vunpack.c.l.b16 %v1408
    %v1447 = vunpack.c.l.b16 %v1409
    %v1448 = vunpack.c.l.b16 %v1410
    %v1449 = vunpack.c.l.b16 %v1411
    %v1450 = vunpack.c.l.b16 %v1412
    %v1451 = vunpack.c.l.b16 %v1413
    %v1452 = vunpack.c.l.b16 %v1414
    %v1453 = vunpack.c.l.b16 %v1415
    %v1454 = vunpack.c.l.b16 %v1416
    %v1455 = vunpack.c.l.b16 %v1417
    %v1456 = vunpack.c.l.b16 %v1418
    %v1457 = vunpack.c.l.b16 %v1419
    %v1458 = vpack.c.b16 %v1443, %v1442
    %v1459 = vpack.c.b16 %v1445, %v1444
    %v1460 = vpack.c.b16 %v1447, %v1446
    %v1461 = vpack.c.b16 %v1449, %v1448
    %v1462 = vpack.c.b16 %v1451, %v1450
    %v1463 = vpack.c.b16 %v1453, %v1452
    %v1464 = vpack.c.b16 %v1455, %v1454
    %v1465 = vpack.c.b16 %v1457, %v1456
    %1474 = vmatprep.subr.bf16.mxu0 0
    %1475 = vmatpush1.bf16.msra.mxu0 %v1458
    %1476 = vmatprep.subr.bf16.mxu0 0
    %1477 = vmatpush1.bf16.msra.mxu0 %v1459
    %1478 = vmatprep.subr.bf16.mxu0 0
    %1479 = vmatpush1.bf16.msra.mxu0 %v1460
    %1480 = vmatprep.subr.bf16.mxu0 0
    %1481 = vmatpush1.bf16.msra.mxu0 %v1461
    %1482 = vmatprep.subr.bf16.mxu0 0
    %1483 = vmatpush1.bf16.msra.mxu0 %v1462
    %1484 = vmatprep.subr.bf16.mxu0 0
    %1485 = vmatpush1.bf16.msra.mxu0 %v1463
    %1486 = vmatprep.subr.bf16.mxu0 0
    %1487 = vmatpush1.bf16.msra.mxu0 %v1464
    %1488 = vmatprep.subr.bf16.mxu0 0
    %1489 = vmatpush1.bf16.msra.mxu0 %v1465
    %1490 = vmatprep.subr.bf16.mxu0 0
    %1491 = vmatpush1.bf16.msra.mxu0 0
    %1492 = vmatprep.subr.bf16.mxu0 0
    %1493 = vmatpush1.bf16.msra.mxu0 0
    %1494 = vmatprep.subr.bf16.mxu0 0
    %1495 = vmatpush1.bf16.msra.mxu0 0
    %1496 = vmatprep.subr.bf16.mxu0 0
    %1497 = vmatpush1.bf16.msra.mxu0 0
    %1498 = vmatprep.subr.bf16.mxu0 0
    %1499 = vmatpush1.bf16.msra.mxu0 0
    %1500 = vmatprep.subr.bf16.mxu0 0
    %1501 = vmatpush1.bf16.msra.mxu0 0
    %1502 = vmatprep.subr.bf16.mxu0 0
    %1503 = vmatpush1.bf16.msra.mxu0 0
    %1504 = vmatprep.subr.bf16.mxu0 0
    %1505 = vmatpush1.bf16.msra.mxu0 0
    %1506 = vmatprep.mubr.bf16.mxu0 0
    %1507 = vmatmul.mubr.bf16.gmra.mrb[0].mxu0 %v1424
    %v1508 = vpop.f32.mrb[0].mxu0
    %v1509 = vadd.f32 %v1420, %v1508
    %v1510 = vpop.f32.mrb[0].mxu0
    %v1511 = vpop.f32.mrb[0].mxu0
    %v1512 = vpop.f32.mrb[0].mxu0
    %1513 = vdwg.mxu0
    %v1514 = vmax.f32 %v1509, 0.0
    %v1515 = vpack.c.bf16 %v1514, %v1514
    %v1516 = vld [vmem:[#allocation7] sm:$0xf]
    %v1517 = vld [vmem:[#allocation7 + $0x4] sm:$0xf]
    %v1518 = vld [vmem:[#allocation7 + $0x8] sm:$0xf]
    %v1519 = vld [vmem:[#allocation7 + $0xc] sm:$0xf]
    %v1520 = vld [vmem:[#allocation7 + $0x10] sm:$0xf]
    %v1521 = vld [vmem:[#allocation7 + $0x14] sm:$0xf]
    %v1522 = vld [vmem:[#allocation7 + $0x18] sm:$0xf]
    %v1523 = vld [vmem:[#allocation7 + $0x1c] sm:$0xf]
    %v1524 = vld [vmem:[#allocation7 + $0x20] sm:$0xf]
    %v1525 = vld [vmem:[#allocation7 + $0x24] sm:$0xf]
    %v1526 = vld [vmem:[#allocation7 + $0x28] sm:$0xf]
    %v1527 = vld [vmem:[#allocation7 + $0x2c] sm:$0xf]
    %v1528 = vld [vmem:[#allocation7 + $0x30] sm:$0xf]
    %v1529 = vld [vmem:[#allocation7 + $0x34] sm:$0xf]
    %v1530 = vld [vmem:[#allocation7 + $0x38] sm:$0xf]
    %v1531 = vld [vmem:[#allocation7 + $0x3c] sm:$0xf]
    %v1532 = vld [vmem:[%s6] sm:$0x1]
    %v1549 = vunpack.c.l.b16 %v1516
    %v1550 = vunpack.c.l.b16 %v1517
    %v1551 = vunpack.c.l.b16 %v1518
    %v1552 = vunpack.c.l.b16 %v1519
    %v1553 = vunpack.c.l.b16 %v1520
    %v1554 = vunpack.c.l.b16 %v1521
    %v1555 = vunpack.c.l.b16 %v1522
    %v1556 = vunpack.c.l.b16 %v1523
    %v1557 = vunpack.c.l.b16 %v1524
    %v1558 = vunpack.c.l.b16 %v1525
    %v1559 = vunpack.c.l.b16 %v1526
    %v1560 = vunpack.c.l.b16 %v1527
    %v1561 = vunpack.c.l.b16 %v1528
    %v1562 = vunpack.c.l.b16 %v1529
    %v1563 = vunpack.c.l.b16 %v1530
    %v1564 = vunpack.c.l.b16 %v1531
    %v1565 = vpack.c.b16 %v1550, %v1549
    %v1566 = vpack.c.b16 %v1552, %v1551
    %v1567 = vpack.c.b16 %v1554, %v1553
    %v1568 = vpack.c.b16 %v1556, %v1555
    %v1569 = vpack.c.b16 %v1558, %v1557
    %v1570 = vpack.c.b16 %v1560, %v1559
    %v1571 = vpack.c.b16 %v1562, %v1561
    %v1572 = vpack.c.b16 %v1564, %v1563
    %1581 = vmatprep.subr.bf16.mxu0 0
    %1582 = vmatpush1.bf16.msra.mxu0 %v1565
    %1583 = vmatprep.subr.bf16.mxu0 0
    %1584 = vmatpush1.bf16.msra.mxu0 %v1566
    %1585 = vmatprep.subr.bf16.mxu0 0
    %1586 = vmatpush1.bf16.msra.mxu0 %v1567
    %1587 = vmatprep.subr.bf16.mxu0 0
    %1588 = vmatpush1.bf16.msra.mxu0 %v1568
    %1589 = vmatprep.subr.bf16.mxu0 0
    %1590 = vmatpush1.bf16.msra.mxu0 %v1569
    %1591 = vmatprep.subr.bf16.mxu0 0
    %1592 = vmatpush1.bf16.msra.mxu0 %v1570
    %1593 = vmatprep.subr.bf16.mxu0 0
    %1594 = vmatpush1.bf16.msra.mxu0 %v1571
    %1595 = vmatprep.subr.bf16.mxu0 0
    %1596 = vmatpush1.bf16.msra.mxu0 %v1572
    %1597 = vmatprep.subr.bf16.mxu0 0
    %1598 = vmatpush1.bf16.msra.mxu0 0
    %1599 = vmatprep.subr.bf16.mxu0 0
    %1600 = vmatpush1.bf16.msra.mxu0 0
    %1601 = vmatprep.subr.bf16.mxu0 0
    %1602 = vmatpush1.bf16.msra.mxu0 0
    %1603 = vmatprep.subr.bf16.mxu0 0
    %1604 = vmatpush1.bf16.msra.mxu0 0
    %1605 = vmatprep.subr.bf16.mxu0 0
    %1606 = vmatpush1.bf16.msra.mxu0 0
    %1607 = vmatprep.subr.bf16.mxu0 0
    %1608 = vmatpush1.bf16.msra.mxu0 0
    %1609 = vmatprep.subr.bf16.mxu0 0
    %1610 = vmatpush1.bf16.msra.mxu0 0
    %1611 = vmatprep.subr.bf16.mxu0 0
    %1612 = vmatpush1.bf16.msra.mxu0 0
    %1613 = vmatprep.mubr.bf16.mxu0 0
    %1614 = vmatmul.mubr.bf16.gmra.mrb[0].mxu0 %v1515
    %v1615 = vpop.f32.mrb[0].mxu0
    %v1616 = vadd.f32 %v1532, %v1615
    %v1617 = vpop.f32.mrb[0].mxu0
    %v1618 = vpop.f32.mrb[0].mxu0
    %v1619 = vpop.f32.mrb[0].mxu0
    %1620 = vdwg.mxu0
    %v1621 = vlaneseq
    %v1622 = vand.u32 %v1621, 127
    %vm1623 = vcmp.lt.s32.totalorder %v1622, 2
    %v1624 = vsel %vm1623, %v1616, -inf
    %v1625 = vsel %vm101, %v1624, -inf
    %1626 = vmax.xlane.f32.xlu0 %v1625
    %v1627 = vpop.xlane.xlu0 %1626
    %v1628 = vsub.f32 %v1616, %v1627
    %v1629 = vmul.f32 %v1628, 1.442695
    %v1630 = vpow.pop %v1629
    %v1631 = vsel %vm1623, %v1630, 0.0
    %v1632 = vsel %vm101, %v1631, 0.0
    %1633 = vadd.xlane.f32.xlu0 %v1632
    %v1634 = vpop.xlane.xlu0 %1633
    %v1635 = vrcp.pop %v1634
    %v1636 = vmul.f32 %v1631, %v1635
    %v1637 = vsel %vm1623, %v1636, %v1616
    %1638 = vst [vmem:[#allocation8] sm:$0x1] %v1637
    // Predicated region
    $region42: #{tpu_custom_call.1} parent=1 // pred_check
      _
    $region43: #{tpu_custom_call.1} parent=1 // pred_check_branch
      %1640 = sbr.rel (0) target = $region45
    $region44: #{tpu_custom_call.1} parent=1 // pred_region
      %s1642 = ssub.s32 16, 16
      %1643 = vsyncadd [#allocation4], %s1642
      %s1645 = sshll.u32 [#allocation8], 4
      %s1646 = int_to_ptr.vmem [resolvable:$true] %s1645
      %1648 = dma.vmem_to_hbm [thread:$0]  %s1646, 16, %s7, [#allocation4]
    $region45: #{tpu_custom_call.1} parent=1 // pred_fallthru
      _
    // Predicated region
    $region46: #{tpu_custom_call.1} parent=1 // pred_check
      _
    $region47: #{tpu_custom_call.1} parent=1 // pred_check_branch
      %1650 = sbr.rel (0) target = $region49
    $region48: #{tpu_custom_call.1} parent=1 // pred_region
      %1651 = dma.done [#allocation4], 16
    $region49: #{tpu_custom_call.1} parent=1 // pred_fallthru
      _
    %1652 = vsyncpa [#allocation3], 1
    %1653 = vsyncpa [#allocation6], 1
    %1654 = vsyncpa [#allocation4], 1

</llo_original>
